<compile_context>
chip_gen: v5e
topology: v5e:2x2
jax: 0.10.0
libtpu: 0.0.40
codegen_flags: <defaults>
</compile_context>

<pallas_src>
import functools
import math

import jax
import jax.numpy as jnp
from jax.experimental import pallas as pl
from jax.experimental.pallas import tpu as pltpu

NEG_INF = -1e30  # large finite negative: fully-masked rows -> uniform avg, no NaN


def _pick_tile(n, cap=512):
    """Row tile: full extent when small, otherwise a sublane-friendly cap.

    Non-dividing tiles are fine: grids use cdiv and Pallas masks the ragged
    last block (rows are independent; padded rows' writes are discarded)."""
    return n if n <= cap else cap


def _vmem_limit_bytes(nbytes):
    """Explicit scoped-VMEM request: need + headroom, floored near the default
    and capped below v7x's 64 MiB per-TC physical budget."""
    return int(min(max(int(nbytes * 1.5) + (2 << 20), 32 << 20), 60 << 20))


def _layer_norm_f32(x, gamma, beta, eps=1e-5):
    x = x.astype(jnp.float32)
    mu = jnp.mean(x, axis=-1, keepdims=True)
    xc = x - mu
    var = jnp.mean(xc * xc, axis=-1, keepdims=True)  # biased var (PyTorch LN)
    return xc * jax.lax.rsqrt(var + eps) * gamma + beta


# --------------------------------------------------------------------------
# Fused LayerNorm + multi-head attention + out-proj + residual.
# grid = (B, Lq_tiles).  K/V (LayerNorm + projection) cached per batch in VMEM.
# --------------------------------------------------------------------------
def _attn_block_kernel(q_ref, kv_ref, kpm_ref, g_ref, b_ref,
                       wq_ref, wk_ref, wv_ref,
                       bq_ref, bk_ref, bv_ref,
                       wo_ref, bo_ref,
                       o_ref,
                       k_sc, v_sc, q_sc, attn_sc,
                       *, num_heads, head_dim, q_tile, causal):
    qi = pl.program_id(1)
    cdt = k_sc.dtype                 # MXU operand dtype == parameter dtype
    Lk = kv_ref.shape[1]

    # ---- once per batch: LN(key) + full-width K/V projections ----------
    @pl.when(qi == 0)
    def _():
        kn = _layer_norm_f32(kv_ref[0], g_ref[...], b_ref[...]).astype(cdt)
        k_sc[...] = (jnp.dot(kn, wk_ref[...],
                             preferred_element_type=jnp.float32)
                     + bk_ref[...]).astype(cdt)
        v_sc[...] = (jnp.dot(kn, wv_ref[...],
                             preferred_element_type=jnp.float32)
                     + bv_ref[...]).astype(cdt)

    # ---- once per (batch, q-tile): LN(query) + full-width Q projection --
    qn = _layer_norm_f32(q_ref[0], g_ref[...], b_ref[...])
    q_sc[...] = (jnp.dot(qn.astype(cdt), wq_ref[...],
                         preferred_element_type=jnp.float32)
                 + bq_ref[...]).astype(cdt)          # 1/sqrt(hd) folded in wq/bq

    # additive mask built once per (batch, q-tile), shared by all heads
    bias = kpm_ref[0].astype(jnp.float32)            # (1, Lk)
    if causal:
        row = qi * q_tile + jax.lax.broadcasted_iota(jnp.int32, (q_tile, Lk), 0)
        col = jax.lax.broadcasted_iota(jnp.int32, (q_tile, Lk), 1)
        bias = bias + jnp.where(col > row, NEG_INF, 0.0)

    # ---- per head: scores / softmax / PV (unrolled, num_heads is static) -
    for h in range(num_heads):
        lo = h * head_dim
        q_h = q_sc[:, lo:lo + head_dim]              # (tq, hd)
        k_h = k_sc[:, lo:lo + head_dim]              # (Lk, hd)
        v_h = v_sc[:, lo:lo + head_dim]              # (Lk, hd)
        # scores via dot_general contracting last dims (MXU "NT", no .T copy)
        s = jax.lax.dot_general(q_h, k_h, (((1,), (1,)), ((), ())),
                                preferred_element_type=jnp.float32) + bias
        m = jnp.max(s, axis=-1, keepdims=True)
        p = jnp.exp(s - m)
        inv = 1.0 / jnp.sum(p, axis=-1, keepdims=True)   # exact; tiny (tq, 1)
        oh = jnp.dot((p * inv).astype(cdt), v_h,
                     preferred_element_type=jnp.float32)  # (tq, hd)
        attn_sc[:, lo:lo + head_dim] = oh.astype(cdt)

    # ---- out-projection once at full width + residual (normalized query) -
    y = jnp.dot(attn_sc[...], wo_ref[...],
                preferred_element_type=jnp.float32) + bo_ref[...]
    o_ref[0] = (qn + y).astype(o_ref.dtype)


def transformer_attention(x_q, x_kv, kpm_bias, attn_params, num_heads, causal):
    (ln_g, ln_b, wq, wk, wv, bq, bk, bv, wo, bo) = attn_params
    B, Lq, D = x_q.shape
    Lk = x_kv.shape[1]
    hd = D // num_heads
    tq = _pick_tile(Lq)
    nq = pl.cdiv(Lq, tq)
    cdt = wq.dtype

    kernel = functools.partial(_attn_block_kernel,
                               num_heads=num_heads, head_dim=hd,
                               q_tile=tq, causal=causal)

    x_it = jnp.dtype(x_q.dtype).itemsize
    w_it = jnp.dtype(cdt).itemsize
    block_bytes = 2 * (tq * D * x_it          # q in
                       + Lk * D * x_it        # kv in
                       + Lk * 4               # kpm bias
                       + 2 * D * 4            # ln gamma / beta
                       + 4 * D * D * w_it     # wq wk wv wo
                       + 4 * D * w_it         # bq bk bv bo
                       + tq * D * x_it)       # out
    scratch_bytes = (2 * Lk * D + 2 * tq * D) * w_it
    vmem_limit = _vmem_limit_bytes(block_bytes + scratch_bytes)

    return pl.pallas_call(
        kernel,
        out_shape=jax.ShapeDtypeStruct((B, Lq, D), x_q.dtype),
        grid=(B, nq),
        in_specs=[
            pl.BlockSpec((1, tq, D), lambda b, qi: (b, qi, 0)),   # query
            pl.BlockSpec((1, Lk, D), lambda b, qi: (b, 0, 0)),    # key (=value)
            pl.BlockSpec((1, 1, Lk), lambda b, qi: (b, 0, 0)),    # kpm bias
            pl.BlockSpec((1, D), lambda b, qi: (0, 0)),           # ln gamma
            pl.BlockSpec((1, D), lambda b, qi: (0, 0)),           # ln beta
            pl.BlockSpec((D, D), lambda b, qi: (0, 0)),           # wq (scaled)
            pl.BlockSpec((D, D), lambda b, qi: (0, 0)),           # wk
            pl.BlockSpec((D, D), lambda b, qi: (0, 0)),           # wv
            pl.BlockSpec((1, D), lambda b, qi: (0, 0)),           # bq (scaled)
            pl.BlockSpec((1, D), lambda b, qi: (0, 0)),           # bk
            pl.BlockSpec((1, D), lambda b, qi: (0, 0)),           # bv
            pl.BlockSpec((D, D), lambda b, qi: (0, 0)),           # wo
            pl.BlockSpec((1, D), lambda b, qi: (0, 0)),           # bo
        ],
        out_specs=pl.BlockSpec((1, tq, D), lambda b, qi: (b, qi, 0)),
        scratch_shapes=[
            pltpu.VMEM((Lk, D), cdt),   # K projection  (cached per batch)
            pltpu.VMEM((Lk, D), cdt),   # V projection  (cached per batch)
            pltpu.VMEM((tq, D), cdt),   # Q projection  (per q-tile)
            pltpu.VMEM((tq, D), cdt),   # assembled head outputs (per q-tile)
        ],
        compiler_params=pltpu.CompilerParams(
            dimension_semantics=("parallel", "arbitrary"),
            vmem_limit_bytes=vmem_limit),
    )(x_q, x_kv, kpm_bias, ln_g, ln_b, wq, wk, wv, bq, bk, bv, wo, bo)


# --------------------------------------------------------------------------
# Fused FeedForwardBlock: LN -> FF1 -> ReLU -> FF2 -> residual (with normed x)
# grid over (B*L) row tiles.
# --------------------------------------------------------------------------
def _ffn_kernel(x_ref, g_ref, b_ref, w1_ref, b1_ref, w2_ref, b2_ref, o_ref):
    xn = _layer_norm_f32(x_ref[...], g_ref[...], b_ref[...])
    cdt = w1_ref.dtype
    h1 = jnp.dot(xn.astype(cdt), w1_ref[...],
                 preferred_element_type=jnp.float32) + b1_ref[...]
    h1 = jnp.maximum(h1, 0.0)
    y = jnp.dot(h1.astype(cdt), w2_ref[...],
                preferred_element_type=jnp.float32) + b2_ref[...]
    # TODO(synk): relu_dropout / res_dropout are identity (eval mode)
    o_ref[...] = (xn + y).astype(o_ref.dtype)


def feed_forward_block(x, ffn_params):
    ln_g, ln_b, w1, b1, w2, b2 = ffn_params
    B, L, D = x.shape
    F = w1.shape[1]
    rows = B * L
    xr = x.reshape(rows, D)
    tm = _pick_tile(rows)
    x_it = jnp.dtype(x.dtype).itemsize
    w_it = jnp.dtype(w1.dtype).itemsize
    block_bytes = 2 * (tm * D * x_it + 2 * D * 4
                       + (D * F + F + F * D + D) * w_it
                       + tm * D * x_it)
    vmem_limit = _vmem_limit_bytes(block_bytes)
    out = pl.pallas_call(
        _ffn_kernel,
        out_shape=jax.ShapeDtypeStruct((rows, D), x.dtype),
        grid=(pl.cdiv(rows, tm),),
        in_specs=[
            pl.BlockSpec((tm, D), lambda i: (i, 0)),
            pl.BlockSpec((1, D), lambda i: (0, 0)),
            pl.BlockSpec((1, D), lambda i: (0, 0)),
            pl.BlockSpec((D, F), lambda i: (0, 0)),
            pl.BlockSpec((1, F), lambda i: (0, 0)),
            pl.BlockSpec((F, D), lambda i: (0, 0)),
            pl.BlockSpec((1, D), lambda i: (0, 0)),
        ],
        out_specs=pl.BlockSpec((tm, D), lambda i: (i, 0)),
        compiler_params=pltpu.CompilerParams(
            dimension_semantics=("parallel",),
            vmem_limit_bytes=vmem_limit),
    )(xr, ln_g, ln_b, w1, b1, w2, b2)
    return out.reshape(B, L, D)


# --------------------------------------------------------------------------
# One-time parameter preparation (hoisted out of the forward path):
# in_proj split / transposes, out_proj transpose, FFN transposes, and the
# 1/sqrt(head_dim) softmax scale folded into Wq / bq.
# --------------------------------------------------------------------------
def prepare_encoder_params(params, num_heads, compute_dtype=None):
    (ln1_g, ln1_b, in_w, in_b, out_w, out_b,
     ln2_g, ln2_b, ff1_w, ff1_b, ff2_w, ff2_b) = params
    D = out_w.shape[0]
    hd = D // num_heads
    scale = 1.0 / math.sqrt(hd)

    def cast(a):
        return a if compute_dtype is None else a.astype(compute_dtype)

    wq = cast(in_w[0 * D:1 * D].T * scale)            # (D, D), pre-scaled
    wk = cast(in_w[1 * D:2 * D].T)
    wv = cast(in_w[2 * D:3 * D].T)
    bq = cast((in_b[0 * D:1 * D] * scale).reshape(1, D))
    bk = cast(in_b[1 * D:2 * D].reshape(1, D))
    bv = cast(in_b[2 * D:3 * D].reshape(1, D))
    wo = cast(out_w.T)                                 # (D, D)
    bo = cast(out_b.reshape(1, D))
    attn_params = (ln1_g.reshape(1, D), ln1_b.reshape(1, D),
                   wq, wk, wv, bq, bk, bv, wo, bo)

    F = ff1_w.shape[0]
    ffn_params = (ln2_g.reshape(1, D), ln2_b.reshape(1, D),
                  cast(ff1_w.T), cast(ff1_b.reshape(1, F)),
                  cast(ff2_w.T), cast(ff2_b.reshape(1, D)))
    return attn_params, ffn_params


def encoder_block(query, key, key_padding_mask, attn_mask, prepared, num_heads):
    attn_params, ffn_params = prepared
    if key is None:
        key = query
    B, _, _ = query.shape
    Lk = key.shape[1]
    # Tiny (B, 1, Lk) additive key-padding bias (causal mask is made in-kernel).
    if key_padding_mask is None:
        kpm_bias = jnp.zeros((B, 1, Lk), jnp.float32)
    else:
        kpm_bias = jnp.where(key_padding_mask, NEG_INF, 0.0
                             ).astype(jnp.float32).reshape(B, 1, Lk)
    # TODO(synk): attn_mask is a boolean causal flag (as in the PyTorch module),
    #             arbitrary float masks are not supported.
    x = transformer_attention(query, key, kpm_bias, attn_params, num_heads,
                              bool(attn_mask))
    return feed_forward_block(x, ffn_params)


# --------------------------------------------------------------------------
# Pure-JAX reference (same math, no Pallas) for correctness check.
# --------------------------------------------------------------------------
def reference_encoder_block(query, key, key_padding_mask, attn_mask, params,
                            num_heads):
    (ln1_g, ln1_b, in_w, in_b, out_w, out_b,
     ln2_g, ln2_b, ff1_w, ff1_b, ff2_w, ff2_b) = params
    if key is None:
        key = query

    def ln(x, g, b):
        mu = jnp.mean(x, -1, keepdims=True)
        var = jnp.mean((x - mu) ** 2, -1, keepdims=True)
        return (x - mu) * jax.lax.rsqrt(var + 1e-5) * g + b

    qn = ln(query, ln1_g, ln1_b)
    kn = ln(key, ln1_g, ln1_b)
    vn = kn
    B, Lq, D = qn.shape
    Lk = kn.shape[1]
    H = num_heads
    hd = D // H

    q = (qn @ in_w[:D].T + in_b[:D]).reshape(B, Lq, H, hd).transpose(0, 2, 1, 3)
    k = (kn @ in_w[D:2 * D].T + in_b[D:2 * D]).reshape(B, Lk, H, hd).transpose(0, 2, 1, 3)
    v = (vn @ in_w[2 * D:].T + in_b[2 * D:]).reshape(B, Lk, H, hd).transpose(0, 2, 1, 3)

    s = jnp.einsum("bhqd,bhkd->bhqk", q, k) / math.sqrt(hd)
    if attn_mask:
        future = jnp.triu(jnp.ones((Lq, Lk)), k=1)
        s = s + jnp.where(future == 1.0, -jnp.inf, 0.0)[None, None]
    if key_padding_mask is not None:
        s = s + jnp.where(key_padding_mask, -jnp.inf, 0.0)[:, None, None, :]
    p = jax.nn.softmax(s, axis=-1)
    o = jnp.einsum("bhqk,bhkd->bhqd", p, v).transpose(0, 2, 1, 3).reshape(B, Lq, D)
    x = qn + (o @ out_w.T + out_b)

    xn = ln(x, ln2_g, ln2_b)
    y = jax.nn.relu(xn @ ff1_w.T + ff1_b) @ ff2_w.T + ff2_b
    return xn + y


if __name__ == "__main__":
    # Small config: model_dims=32, num_heads=4, feed_forward_dims=64, B=2, L=8
    B, L, D, H, F = 2, 8, 32, 4, 64

    k0 = jax.random.PRNGKey(0)
    ks = jax.random.split(k0, 16)

    query = jax.random.normal(ks[0], (B, L, D), jnp.float32)
    key_t = jax.random.normal(ks[1], (B, L, D), jnp.float32)

    # deterministic "synthetic checkpoint"
    ln1_g = 1.0 + 0.1 * jax.random.normal(ks[2], (D,), jnp.float32)
    ln1_b = 0.1 * jax.random.normal(ks[3], (D,), jnp.float32)
    lim = math.sqrt(6.0 / (D + D))
    in_w = jax.random.uniform(ks[4], (3 * D, D), jnp.float32, -lim, lim)
    in_b = 0.05 * jax.random.normal(ks[5], (3 * D,), jnp.float32)
    out_w = jax.random.uniform(ks[6], (D, D), jnp.float32, -lim, lim)
    out_b = 0.05 * jax.random.normal(ks[7], (D,), jnp.float32)
    ln2_g = 1.0 + 0.1 * jax.random.normal(ks[8], (D,), jnp.float32)
    ln2_b = 0.1 * jax.random.normal(ks[9], (D,), jnp.float32)
    lim1 = math.sqrt(6.0 / (D + F))
    ff1_w = jax.random.uniform(ks[10], (F, D), jnp.float32, -lim1, lim1)
    ff1_b = 0.05 * jax.random.normal(ks[11], (F,), jnp.float32)
    ff2_w = jax.random.uniform(ks[12], (D, F), jnp.float32, -lim1, lim1)
    ff2_b = 0.05 * jax.random.normal(ks[13], (D,), jnp.float32)

    params = (ln1_g, ln1_b, in_w, in_b, out_w, out_b,
              ln2_g, ln2_b, ff1_w, ff1_b, ff2_w, ff2_b)

    # Weight re-layout done once, at parameter-load time (not per forward call).
    prepared = prepare_encoder_params(params, H)

    # key_padding_mask: True == ignore that key; pad last 2 keys of batch 1
    kpm = jnp.zeros((B, L), dtype=bool).at[1, -2:].set(True)

    # Exact softmax reciprocal -> tolerance tightened vs. previous version.
    ATOL = RTOL = 2e-3

    # 1) cross-attention path (key provided), causal mask + key padding
    out1 = jax.block_until_ready(
        encoder_block(query, key_t, kpm, True, prepared, H))
    ref1 = reference_encoder_block(query, key_t, kpm, True, params, H)
    assert out1.shape == (B, L, D)
    assert bool(jnp.all(jnp.isfinite(out1)))
    assert jnp.allclose(out1, ref1, atol=ATOL, rtol=RTOL), \
        f"max err {jnp.max(jnp.abs(out1 - ref1))}"

    # 2) self-attention path (key is None), no masks
    out2 = jax.block_until_ready(
        encoder_block(query, None, None, False, prepared, H))
    ref2 = reference_encoder_block(query, None, None, False, params, H)
    assert bool(jnp.all(jnp.isfinite(out2)))
    assert jnp.allclose(out2, ref2, atol=ATOL, rtol=RTOL), \
        f"max err {jnp.max(jnp.abs(out2 - ref2))}"

    print("KERNEL_OK")
</pallas_src>

<mosaic_0001>
module attributes {stable_mosaic.version = 11 : i64} {
  func.func @_attn_block_kernel(%arg0: i32, %arg1: i32, %arg2: memref<1x8x32xf32, #tpu.memory_space<vmem>>, %arg3: memref<1x8x32xf32, #tpu.memory_space<vmem>>, %arg4: memref<1x1x8xf32, #tpu.memory_space<vmem>>, %arg5: memref<1x32xf32, #tpu.memory_space<vmem>>, %arg6: memref<1x32xf32, #tpu.memory_space<vmem>>, %arg7: memref<32x32xf32, #tpu.memory_space<vmem>>, %arg8: memref<32x32xf32, #tpu.memory_space<vmem>>, %arg9: memref<32x32xf32, #tpu.memory_space<vmem>>, %arg10: memref<1x32xf32, #tpu.memory_space<vmem>>, %arg11: memref<1x32xf32, #tpu.memory_space<vmem>>, %arg12: memref<1x32xf32, #tpu.memory_space<vmem>>, %arg13: memref<32x32xf32, #tpu.memory_space<vmem>>, %arg14: memref<1x32xf32, #tpu.memory_space<vmem>>, %arg15: memref<1x8x32xf32, #tpu.memory_space<vmem>>, %arg16: memref<8x32xf32, #tpu.memory_space<vmem>>, %arg17: memref<8x32xf32, #tpu.memory_space<vmem>>, %arg18: memref<8x32xf32, #tpu.memory_space<vmem>>, %arg19: memref<8x32xf32, #tpu.memory_space<vmem>>) attributes {dimension_semantics = [#tpu.dimension_semantics<parallel>, #tpu.dimension_semantics<arbitrary>], iteration_bounds = array<i64: 2, 1>, scalar_prefetch = 0 : i64, scratch_operands = 4 : i64, tpu.core_type = #tpu.core_type<tc>, window_params = [{transform_indices = @transform_0, window_bounds = array<i64: 1, 8, 32>}, {transform_indices = @transform_1, window_bounds = array<i64: 1, 8, 32>}, {transform_indices = @transform_2, window_bounds = array<i64: 1, 1, 8>}, {pipeline_mode = #tpu.pipeline_mode<synchronous>, transform_indices = @transform_3, window_bounds = array<i64: 1, 32>}, {pipeline_mode = #tpu.pipeline_mode<synchronous>, transform_indices = @transform_4, window_bounds = array<i64: 1, 32>}, {pipeline_mode = #tpu.pipeline_mode<synchronous>, transform_indices = @transform_5, window_bounds = array<i64: 32, 32>}, {pipeline_mode = #tpu.pipeline_mode<synchronous>, transform_indices = @transform_6, window_bounds = array<i64: 32, 32>}, {pipeline_mode = #tpu.pipeline_mode<synchronous>, transform_indices = @transform_7, window_bounds = array<i64: 32, 32>}, {pipeline_mode = #tpu.pipeline_mode<synchronous>, transform_indices = @transform_8, window_bounds = array<i64: 1, 32>}, {pipeline_mode = #tpu.pipeline_mode<synchronous>, transform_indices = @transform_9, window_bounds = array<i64: 1, 32>}, {pipeline_mode = #tpu.pipeline_mode<synchronous>, transform_indices = @transform_10, window_bounds = array<i64: 1, 32>}, {pipeline_mode = #tpu.pipeline_mode<synchronous>, transform_indices = @transform_11, window_bounds = array<i64: 32, 32>}, {pipeline_mode = #tpu.pipeline_mode<synchronous>, transform_indices = @transform_12, window_bounds = array<i64: 1, 32>}, {transform_indices = @transform_13, window_bounds = array<i64: 1, 8, 32>}]} {
    %c0_i32 = arith.constant 0 : i32
    %0 = arith.cmpi eq, %arg1, %c0_i32 : i32
    %1 = arith.extui %0 : i1 to i32
    %c0_i32_0 = arith.constant 0 : i32
    %2 = arith.cmpi ne, %1, %c0_i32_0 : i32
    scf.if %2 {
      %c0_82 = arith.constant 0 : index
      %c0_83 = arith.constant 0 : index
      %c0_84 = arith.constant 0 : index
      %128 = vector.load %arg3[%c0_82, %c0_83, %c0_84] : memref<1x8x32xf32, #tpu.memory_space<vmem>>, vector<1x8x32xf32>
      %129 = vector.shape_cast %128 : vector<1x8x32xf32> to vector<8x32xf32>
      %c0_85 = arith.constant 0 : index
      %c0_86 = arith.constant 0 : index
      %130 = vector.load %arg5[%c0_85, %c0_86] : memref<1x32xf32, #tpu.memory_space<vmem>>, vector<1x32xf32>
      %c0_87 = arith.constant 0 : index
      %c0_88 = arith.constant 0 : index
      %131 = vector.load %arg6[%c0_87, %c0_88] : memref<1x32xf32, #tpu.memory_space<vmem>>, vector<1x32xf32>
      %cst_89 = arith.constant dense<0.000000e+00> : vector<8xf32>
      %132 = vector.multi_reduction <add>, %129, %cst_89 [1] : vector<8x32xf32> to vector<8xf32>
      %133 = vector.shape_cast %132 : vector<8xf32> to vector<8x1xf32>
      %cst_90 = arith.constant 3.200000e+01 : f32
      %134 = vector.broadcast %cst_90 : f32 to vector<8x1xf32>
      %135 = arith.divf %133, %134 : vector<8x1xf32>
      %136 = vector.broadcast %135 : vector<8x1xf32> to vector<8x32xf32>
      %137 = arith.subf %129, %136 : vector<8x32xf32>
      %138 = arith.mulf %137, %137 : vector<8x32xf32>
      %cst_91 = arith.constant dense<0.000000e+00> : vector<8xf32>
      %139 = vector.multi_reduction <add>, %138, %cst_91 [1] : vector<8x32xf32> to vector<8xf32>
      %140 = vector.shape_cast %139 : vector<8xf32> to vector<8x1xf32>
      %cst_92 = arith.constant 3.200000e+01 : f32
      %141 = vector.broadcast %cst_92 : f32 to vector<8x1xf32>
      %142 = arith.divf %140, %141 : vector<8x1xf32>
      %cst_93 = arith.constant 9.99999974E-6 : f32
      %143 = vector.broadcast %cst_93 : f32 to vector<8x1xf32>
      %144 = arith.addf %142, %143 : vector<8x1xf32>
      %145 = math.rsqrt %144 : vector<8x1xf32>
      %146 = vector.broadcast %145 : vector<8x1xf32> to vector<8x32xf32>
      %147 = arith.mulf %137, %146 : vector<8x32xf32>
      %148 = vector.broadcast %130 : vector<1x32xf32> to vector<8x32xf32>
      %149 = arith.mulf %147, %148 : vector<8x32xf32>
      %150 = vector.broadcast %131 : vector<1x32xf32> to vector<8x32xf32>
      %151 = arith.addf %149, %150 : vector<8x32xf32>
      %c0_94 = arith.constant 0 : index
      %c0_95 = arith.constant 0 : index
      %152 = vector.load %arg8[%c0_94, %c0_95] : memref<32x32xf32, #tpu.memory_space<vmem>>, vector<32x32xf32>
      %cst_96 = arith.constant dense<0.000000e+00> : vector<8x32xf32>
      %153 = tpu.matmul %151, %152, %cst_96 {dimension_numbers = #tpu.dot_dimension_numbers<[1], [0], [0], [1], [0, 0, 1, 1], [], []>} : vector<8x32xf32>, vector<32x32xf32>, vector<8x32xf32> -> vector<8x32xf32>
      %c0_97 = arith.constant 0 : index
      %c0_98 = arith.constant 0 : index
      %154 = vector.load %arg11[%c0_97, %c0_98] : memref<1x32xf32, #tpu.memory_space<vmem>>, vector<1x32xf32>
      %155 = vector.broadcast %154 : vector<1x32xf32> to vector<8x32xf32>
      %156 = arith.addf %153, %155 : vector<8x32xf32>
      %c0_99 = arith.constant 0 : index
      %c0_100 = arith.constant 0 : index
      %157 = vector.load %arg16[%c0_99, %c0_100] : memref<8x32xf32, #tpu.memory_space<vmem>>, vector<8x32xf32>
      tpu.vector_store %arg16[%c0_99, %c0_100], %156 {strides = array<i32>} : memref<8x32xf32, #tpu.memory_space<vmem>>, vector<8x32xf32>,
      %c0_101 = arith.constant 0 : index
      %c0_102 = arith.constant 0 : index
      %158 = vector.load %arg9[%c0_101, %c0_102] : memref<32x32xf32, #tpu.memory_space<vmem>>, vector<32x32xf32>
      %cst_103 = arith.constant dense<0.000000e+00> : vector<8x32xf32>
      %159 = tpu.matmul %151, %158, %cst_103 {dimension_numbers = #tpu.dot_dimension_numbers<[1], [0], [0], [1], [0, 0, 1, 1], [], []>} : vector<8x32xf32>, vector<32x32xf32>, vector<8x32xf32> -> vector<8x32xf32>
      %c0_104 = arith.constant 0 : index
      %c0_105 = arith.constant 0 : index
      %160 = vector.load %arg12[%c0_104, %c0_105] : memref<1x32xf32, #tpu.memory_space<vmem>>, vector<1x32xf32>
      %161 = vector.broadcast %160 : vector<1x32xf32> to vector<8x32xf32>
      %162 = arith.addf %159, %161 : vector<8x32xf32>
      %c0_106 = arith.constant 0 : index
      %c0_107 = arith.constant 0 : index
      %163 = vector.load %arg17[%c0_106, %c0_107] : memref<8x32xf32, #tpu.memory_space<vmem>>, vector<8x32xf32>
      tpu.vector_store %arg17[%c0_106, %c0_107], %162 {strides = array<i32>} : memref<8x32xf32, #tpu.memory_space<vmem>>, vector<8x32xf32>,
    } else {
    }
    %c0 = arith.constant 0 : index
    %c0_1 = arith.constant 0 : index
    %c0_2 = arith.constant 0 : index
    %3 = vector.load %arg2[%c0, %c0_1, %c0_2] : memref<1x8x32xf32, #tpu.memory_space<vmem>>, vector<1x8x32xf32>
    %4 = vector.shape_cast %3 : vector<1x8x32xf32> to vector<8x32xf32>
    %c0_3 = arith.constant 0 : index
    %c0_4 = arith.constant 0 : index
    %5 = vector.load %arg5[%c0_3, %c0_4] : memref<1x32xf32, #tpu.memory_space<vmem>>, vector<1x32xf32>
    %c0_5 = arith.constant 0 : index
    %c0_6 = arith.constant 0 : index
    %6 = vector.load %arg6[%c0_5, %c0_6] : memref<1x32xf32, #tpu.memory_space<vmem>>, vector<1x32xf32>
    %cst = arith.constant dense<0.000000e+00> : vector<8xf32>
    %7 = vector.multi_reduction <add>, %4, %cst [1] : vector<8x32xf32> to vector<8xf32>
    %8 = vector.shape_cast %7 : vector<8xf32> to vector<8x1xf32>
    %cst_7 = arith.constant 3.200000e+01 : f32
    %9 = vector.broadcast %cst_7 : f32 to vector<8x1xf32>
    %10 = arith.divf %8, %9 : vector<8x1xf32>
    %11 = vector.broadcast %10 : vector<8x1xf32> to vector<8x32xf32>
    %12 = arith.subf %4, %11 : vector<8x32xf32>
    %13 = arith.mulf %12, %12 : vector<8x32xf32>
    %cst_8 = arith.constant dense<0.000000e+00> : vector<8xf32>
    %14 = vector.multi_reduction <add>, %13, %cst_8 [1] : vector<8x32xf32> to vector<8xf32>
    %15 = vector.shape_cast %14 : vector<8xf32> to vector<8x1xf32>
    %cst_9 = arith.constant 3.200000e+01 : f32
    %16 = vector.broadcast %cst_9 : f32 to vector<8x1xf32>
    %17 = arith.divf %15, %16 : vector<8x1xf32>
    %cst_10 = arith.constant 9.99999974E-6 : f32
    %18 = vector.broadcast %cst_10 : f32 to vector<8x1xf32>
    %19 = arith.addf %17, %18 : vector<8x1xf32>
    %20 = math.rsqrt %19 : vector<8x1xf32>
    %21 = vector.broadcast %20 : vector<8x1xf32> to vector<8x32xf32>
    %22 = arith.mulf %12, %21 : vector<8x32xf32>
    %23 = vector.broadcast %5 : vector<1x32xf32> to vector<8x32xf32>
    %24 = arith.mulf %22, %23 : vector<8x32xf32>
    %25 = vector.broadcast %6 : vector<1x32xf32> to vector<8x32xf32>
    %26 = arith.addf %24, %25 : vector<8x32xf32>
    %c0_11 = arith.constant 0 : index
    %c0_12 = arith.constant 0 : index
    %27 = vector.load %arg7[%c0_11, %c0_12] : memref<32x32xf32, #tpu.memory_space<vmem>>, vector<32x32xf32>
    %cst_13 = arith.constant dense<0.000000e+00> : vector<8x32xf32>
    %28 = tpu.matmul %26, %27, %cst_13 {dimension_numbers = #tpu.dot_dimension_numbers<[1], [0], [0], [1], [0, 0, 1, 1], [], []>} : vector<8x32xf32>, vector<32x32xf32>, vector<8x32xf32> -> vector<8x32xf32>
    %c0_14 = arith.constant 0 : index
    %c0_15 = arith.constant 0 : index
    %29 = vector.load %arg10[%c0_14, %c0_15] : memref<1x32xf32, #tpu.memory_space<vmem>>, vector<1x32xf32>
    %30 = vector.broadcast %29 : vector<1x32xf32> to vector<8x32xf32>
    %31 = arith.addf %28, %30 : vector<8x32xf32>
    %c0_16 = arith.constant 0 : index
    %c0_17 = arith.constant 0 : index
    %32 = vector.load %arg18[%c0_16, %c0_17] : memref<8x32xf32, #tpu.memory_space<vmem>>, vector<8x32xf32>
    tpu.vector_store %arg18[%c0_16, %c0_17], %31 {strides = array<i32>} : memref<8x32xf32, #tpu.memory_space<vmem>>, vector<8x32xf32>,
    %c0_18 = arith.constant 0 : index
    %c0_19 = arith.constant 0 : index
    %c0_20 = arith.constant 0 : index
    %33 = vector.load %arg4[%c0_18, %c0_19, %c0_20] : memref<1x1x8xf32, #tpu.memory_space<vmem>>, vector<1x1x8xf32>
    %34 = vector.shape_cast %33 : vector<1x1x8xf32> to vector<1x8xf32>
    %c8_i32 = arith.constant 8 : i32
    %35 = arith.muli %arg1, %c8_i32 : i32
    %36 = tpu.iota {dimensions = array<i32: 0>} : vector<8x8xi32>
    %37 = vector.broadcast %35 : i32 to vector<8x8xi32>
    %38 = arith.addi %37, %36 : vector<8x8xi32>
    %39 = tpu.iota {dimensions = array<i32: 1>} : vector<8x8xi32>
    %40 = arith.cmpi sgt, %39, %38 : vector<8x8xi32>
    %cst_21 = arith.constant -1.000000e+30 : f32
    %cst_22 = arith.constant 0.000000e+00 : f32
    %41 = vector.broadcast %cst_21 : f32 to vector<8x8xf32>
    %42 = vector.broadcast %cst_22 : f32 to vector<8x8xf32>
    %43 = arith.select %40, %41, %42 : vector<8x8xi1>, vector<8x8xf32>
    %44 = vector.broadcast %34 : vector<1x8xf32> to vector<8x8xf32>
    %45 = arith.addf %44, %43 : vector<8x8xf32>
    %c0_23 = arith.constant 0 : index
    %c0_24 = arith.constant 0 : index
    %46 = vector.load %arg18[%c0_23, %c0_24] : memref<8x32xf32, #tpu.memory_space<vmem>>, vector<8x8xf32>
    %c0_25 = arith.constant 0 : index
    %c0_26 = arith.constant 0 : index
    %47 = vector.load %arg16[%c0_25, %c0_26] : memref<8x32xf32, #tpu.memory_space<vmem>>, vector<8x8xf32>
    %c0_27 = arith.constant 0 : index
    %c0_28 = arith.constant 0 : index
    %48 = vector.load %arg17[%c0_27, %c0_28] : memref<8x32xf32, #tpu.memory_space<vmem>>, vector<8x8xf32>
    %cst_29 = arith.constant dense<0.000000e+00> : vector<8x8xf32>
    %49 = tpu.matmul %46, %47, %cst_29 {dimension_numbers = #tpu.dot_dimension_numbers<[1], [1], [0], [0], [0, 0, 1, 0], [], []>} : vector<8x8xf32>, vector<8x8xf32>, vector<8x8xf32> -> vector<8x8xf32>
    %50 = arith.addf %49, %45 : vector<8x8xf32>
    %cst_30 = arith.constant dense<0xFF800000> : vector<8xf32>
    %51 = vector.multi_reduction <maximumf>, %50, %cst_30 [1] : vector<8x8xf32> to vector<8xf32>
    %52 = vector.shape_cast %51 : vector<8xf32> to vector<8x1xf32>
    %53 = vector.broadcast %52 : vector<8x1xf32> to vector<8x8xf32>
    %54 = arith.subf %50, %53 : vector<8x8xf32>
    %55 = math.exp %54 : vector<8x8xf32>
    %cst_31 = arith.constant dense<0.000000e+00> : vector<8xf32>
    %56 = vector.multi_reduction <add>, %55, %cst_31 [1] : vector<8x8xf32> to vector<8xf32>
    %57 = vector.shape_cast %56 : vector<8xf32> to vector<8x1xf32>
    %cst_32 = arith.constant 1.000000e+00 : f32
    %58 = vector.broadcast %cst_32 : f32 to vector<8x1xf32>
    %59 = arith.divf %58, %57 : vector<8x1xf32>
    %60 = vector.broadcast %59 : vector<8x1xf32> to vector<8x8xf32>
    %61 = arith.mulf %55, %60 : vector<8x8xf32>
    %cst_33 = arith.constant dense<0.000000e+00> : vector<8x8xf32>
    %62 = tpu.matmul %61, %48, %cst_33 {dimension_numbers = #tpu.dot_dimension_numbers<[1], [0], [0], [1], [0, 0, 1, 1], [], []>} : vector<8x8xf32>, vector<8x8xf32>, vector<8x8xf32> -> vector<8x8xf32>
    %c0_34 = arith.constant 0 : index
    %c0_35 = arith.constant 0 : index
    %63 = vector.load %arg19[%c0_34, %c0_35] : memref<8x32xf32, #tpu.memory_space<vmem>>, vector<8x8xf32>
    tpu.vector_store %arg19[%c0_34, %c0_35], %62 {strides = array<i32>} : memref<8x32xf32, #tpu.memory_space<vmem>>, vector<8x8xf32>,
    %c0_36 = arith.constant 0 : index
    %c8 = arith.constant 8 : index
    %64 = vector.load %arg18[%c0_36, %c8] : memref<8x32xf32, #tpu.memory_space<vmem>>, vector<8x8xf32>
    %c0_37 = arith.constant 0 : index
    %c8_38 = arith.constant 8 : index
    %65 = vector.load %arg16[%c0_37, %c8_38] : memref<8x32xf32, #tpu.memory_space<vmem>>, vector<8x8xf32>
    %c0_39 = arith.constant 0 : index
    %c8_40 = arith.constant 8 : index
    %66 = vector.load %arg17[%c0_39, %c8_40] : memref<8x32xf32, #tpu.memory_space<vmem>>, vector<8x8xf32>
    %cst_41 = arith.constant dense<0.000000e+00> : vector<8x8xf32>
    %67 = tpu.matmul %64, %65, %cst_41 {dimension_numbers = #tpu.dot_dimension_numbers<[1], [1], [0], [0], [0, 0, 1, 0], [], []>} : vector<8x8xf32>, vector<8x8xf32>, vector<8x8xf32> -> vector<8x8xf32>
    %68 = arith.addf %67, %45 : vector<8x8xf32>
    %cst_42 = arith.constant dense<0xFF800000> : vector<8xf32>
    %69 = vector.multi_reduction <maximumf>, %68, %cst_42 [1] : vector<8x8xf32> to vector<8xf32>
    %70 = vector.shape_cast %69 : vector<8xf32> to vector<8x1xf32>
    %71 = vector.broadcast %70 : vector<8x1xf32> to vector<8x8xf32>
    %72 = arith.subf %68, %71 : vector<8x8xf32>
    %73 = math.exp %72 : vector<8x8xf32>
    %cst_43 = arith.constant dense<0.000000e+00> : vector<8xf32>
    %74 = vector.multi_reduction <add>, %73, %cst_43 [1] : vector<8x8xf32> to vector<8xf32>
    %75 = vector.shape_cast %74 : vector<8xf32> to vector<8x1xf32>
    %cst_44 = arith.constant 1.000000e+00 : f32
    %76 = vector.broadcast %cst_44 : f32 to vector<8x1xf32>
    %77 = arith.divf %76, %75 : vector<8x1xf32>
    %78 = vector.broadcast %77 : vector<8x1xf32> to vector<8x8xf32>
    %79 = arith.mulf %73, %78 : vector<8x8xf32>
    %cst_45 = arith.constant dense<0.000000e+00> : vector<8x8xf32>
    %80 = tpu.matmul %79, %66, %cst_45 {dimension_numbers = #tpu.dot_dimension_numbers<[1], [0], [0], [1], [0, 0, 1, 1], [], []>} : vector<8x8xf32>, vector<8x8xf32>, vector<8x8xf32> -> vector<8x8xf32>
    %c0_46 = arith.constant 0 : index
    %c8_47 = arith.constant 8 : index
    %81 = vector.load %arg19[%c0_46, %c8_47] : memref<8x32xf32, #tpu.memory_space<vmem>>, vector<8x8xf32>
    tpu.vector_store %arg19[%c0_46, %c8_47], %80 {strides = array<i32>} : memref<8x32xf32, #tpu.memory_space<vmem>>, vector<8x8xf32>,
    %c0_48 = arith.constant 0 : index
    %c16 = arith.constant 16 : index
    %82 = vector.load %arg18[%c0_48, %c16] : memref<8x32xf32, #tpu.memory_space<vmem>>, vector<8x8xf32>
    %c0_49 = arith.constant 0 : index
    %c16_50 = arith.constant 16 : index
    %83 = vector.load %arg16[%c0_49, %c16_50] : memref<8x32xf32, #tpu.memory_space<vmem>>, vector<8x8xf32>
    %c0_51 = arith.constant 0 : index
    %c16_52 = arith.constant 16 : index
    %84 = vector.load %arg17[%c0_51, %c16_52] : memref<8x32xf32, #tpu.memory_space<vmem>>, vector<8x8xf32>
    %cst_53 = arith.constant dense<0.000000e+00> : vector<8x8xf32>
    %85 = tpu.matmul %82, %83, %cst_53 {dimension_numbers = #tpu.dot_dimension_numbers<[1], [1], [0], [0], [0, 0, 1, 0], [], []>} : vector<8x8xf32>, vector<8x8xf32>, vector<8x8xf32> -> vector<8x8xf32>
    %86 = arith.addf %85, %45 : vector<8x8xf32>
    %cst_54 = arith.constant dense<0xFF800000> : vector<8xf32>
    %87 = vector.multi_reduction <maximumf>, %86, %cst_54 [1] : vector<8x8xf32> to vector<8xf32>
    %88 = vector.shape_cast %87 : vector<8xf32> to vector<8x1xf32>
    %89 = vector.broadcast %88 : vector<8x1xf32> to vector<8x8xf32>
    %90 = arith.subf %86, %89 : vector<8x8xf32>
    %91 = math.exp %90 : vector<8x8xf32>
    %cst_55 = arith.constant dense<0.000000e+00> : vector<8xf32>
    %92 = vector.multi_reduction <add>, %91, %cst_55 [1] : vector<8x8xf32> to vector<8xf32>
    %93 = vector.shape_cast %92 : vector<8xf32> to vector<8x1xf32>
    %cst_56 = arith.constant 1.000000e+00 : f32
    %94 = vector.broadcast %cst_56 : f32 to vector<8x1xf32>
    %95 = arith.divf %94, %93 : vector<8x1xf32>
    %96 = vector.broadcast %95 : vector<8x1xf32> to vector<8x8xf32>
    %97 = arith.mulf %91, %96 : vector<8x8xf32>
    %cst_57 = arith.constant dense<0.000000e+00> : vector<8x8xf32>
    %98 = tpu.matmul %97, %84, %cst_57 {dimension_numbers = #tpu.dot_dimension_numbers<[1], [0], [0], [1], [0, 0, 1, 1], [], []>} : vector<8x8xf32>, vector<8x8xf32>, vector<8x8xf32> -> vector<8x8xf32>
    %c0_58 = arith.constant 0 : index
    %c16_59 = arith.constant 16 : index
    %99 = vector.load %arg19[%c0_58, %c16_59] : memref<8x32xf32, #tpu.memory_space<vmem>>, vector<8x8xf32>
    tpu.vector_store %arg19[%c0_58, %c16_59], %98 {strides = array<i32>} : memref<8x32xf32, #tpu.memory_space<vmem>>, vector<8x8xf32>,
    %c0_60 = arith.constant 0 : index
    %c24 = arith.constant 24 : index
    %100 = vector.load %arg18[%c0_60, %c24] : memref<8x32xf32, #tpu.memory_space<vmem>>, vector<8x8xf32>
    %c0_61 = arith.constant 0 : index
    %c24_62 = arith.constant 24 : index
    %101 = vector.load %arg16[%c0_61, %c24_62] : memref<8x32xf32, #tpu.memory_space<vmem>>, vector<8x8xf32>
    %c0_63 = arith.constant 0 : index
    %c24_64 = arith.constant 24 : index
    %102 = vector.load %arg17[%c0_63, %c24_64] : memref<8x32xf32, #tpu.memory_space<vmem>>, vector<8x8xf32>
    %cst_65 = arith.constant dense<0.000000e+00> : vector<8x8xf32>
    %103 = tpu.matmul %100, %101, %cst_65 {dimension_numbers = #tpu.dot_dimension_numbers<[1], [1], [0], [0], [0, 0, 1, 0], [], []>} : vector<8x8xf32>, vector<8x8xf32>, vector<8x8xf32> -> vector<8x8xf32>
    %104 = arith.addf %103, %45 : vector<8x8xf32>
    %cst_66 = arith.constant dense<0xFF800000> : vector<8xf32>
    %105 = vector.multi_reduction <maximumf>, %104, %cst_66 [1] : vector<8x8xf32> to vector<8xf32>
    %106 = vector.shape_cast %105 : vector<8xf32> to vector<8x1xf32>
    %107 = vector.broadcast %106 : vector<8x1xf32> to vector<8x8xf32>
    %108 = arith.subf %104, %107 : vector<8x8xf32>
    %109 = math.exp %108 : vector<8x8xf32>
    %cst_67 = arith.constant dense<0.000000e+00> : vector<8xf32>
    %110 = vector.multi_reduction <add>, %109, %cst_67 [1] : vector<8x8xf32> to vector<8xf32>
    %111 = vector.shape_cast %110 : vector<8xf32> to vector<8x1xf32>
    %cst_68 = arith.constant 1.000000e+00 : f32
    %112 = vector.broadcast %cst_68 : f32 to vector<8x1xf32>
    %113 = arith.divf %112, %111 : vector<8x1xf32>
    %114 = vector.broadcast %113 : vector<8x1xf32> to vector<8x8xf32>
    %115 = arith.mulf %109, %114 : vector<8x8xf32>
    %cst_69 = arith.constant dense<0.000000e+00> : vector<8x8xf32>
    %116 = tpu.matmul %115, %102, %cst_69 {dimension_numbers = #tpu.dot_dimension_numbers<[1], [0], [0], [1], [0, 0, 1, 1], [], []>} : vector<8x8xf32>, vector<8x8xf32>, vector<8x8xf32> -> vector<8x8xf32>
    %c0_70 = arith.constant 0 : index
    %c24_71 = arith.constant 24 : index
    %117 = vector.load %arg19[%c0_70, %c24_71] : memref<8x32xf32, #tpu.memory_space<vmem>>, vector<8x8xf32>
    tpu.vector_store %arg19[%c0_70, %c24_71], %116 {strides = array<i32>} : memref<8x32xf32, #tpu.memory_space<vmem>>, vector<8x8xf32>,
    %c0_72 = arith.constant 0 : index
    %c0_73 = arith.constant 0 : index
    %118 = vector.load %arg19[%c0_72, %c0_73] : memref<8x32xf32, #tpu.memory_space<vmem>>, vector<8x32xf32>
    %c0_74 = arith.constant 0 : index
    %c0_75 = arith.constant 0 : index
    %119 = vector.load %arg13[%c0_74, %c0_75] : memref<32x32xf32, #tpu.memory_space<vmem>>, vector<32x32xf32>
    %cst_76 = arith.constant dense<0.000000e+00> : vector<8x32xf32>
    %120 = tpu.matmul %118, %119, %cst_76 {dimension_numbers = #tpu.dot_dimension_numbers<[1], [0], [0], [1], [0, 0, 1, 1], [], []>} : vector<8x32xf32>, vector<32x32xf32>, vector<8x32xf32> -> vector<8x32xf32>
    %c0_77 = arith.constant 0 : index
    %c0_78 = arith.constant 0 : index
    %121 = vector.load %arg14[%c0_77, %c0_78] : memref<1x32xf32, #tpu.memory_space<vmem>>, vector<1x32xf32>
    %122 = vector.broadcast %121 : vector<1x32xf32> to vector<8x32xf32>
    %123 = arith.addf %120, %122 : vector<8x32xf32>
    %124 = arith.addf %26, %123 : vector<8x32xf32>
    %c0_79 = arith.constant 0 : index
    %c0_80 = arith.constant 0 : index
    %c0_81 = arith.constant 0 : index
    %125 = vector.load %arg15[%c0_79, %c0_80, %c0_81] : memref<1x8x32xf32, #tpu.memory_space<vmem>>, vector<1x8x32xf32>
    %126 = vector.shape_cast %125 : vector<1x8x32xf32> to vector<8x32xf32>
    %127 = vector.shape_cast %124 : vector<8x32xf32> to vector<1x8x32xf32>
    tpu.vector_store %arg15[%c0_79, %c0_80, %c0_81], %127 {strides = array<i32>} : memref<1x8x32xf32, #tpu.memory_space<vmem>>, vector<1x8x32xf32>,
    return
  }
  func.func @transform_0(%arg0: i32, %arg1: i32) -> (i32, i32, i32) {
    %c0_i32 = arith.constant 0 : i32
    %c0_i32_0 = arith.constant 0 : i32
    return %arg0, %arg1, %c0_i32 : i32, i32, i32
  }
  func.func @transform_1(%arg0: i32, %arg1: i32) -> (i32, i32, i32) {
    %c0_i32 = arith.constant 0 : i32
    %c0_i32_0 = arith.constant 0 : i32
    %c0_i32_1 = arith.constant 0 : i32
    return %arg0, %c0_i32, %c0_i32_0 : i32, i32, i32
  }
  func.func @transform_2(%arg0: i32, %arg1: i32) -> (i32, i32, i32) {
    %c0_i32 = arith.constant 0 : i32
    %c0_i32_0 = arith.constant 0 : i32
    %c0_i32_1 = arith.constant 0 : i32
    return %arg0, %c0_i32, %c0_i32_0 : i32, i32, i32
  }
  func.func @transform_3(%arg0: i32, %arg1: i32) -> (i32, i32) {
    %c0_i32 = arith.constant 0 : i32
    %c0_i32_0 = arith.constant 0 : i32
    %c0_i32_1 = arith.constant 0 : i32
    return %c0_i32, %c0_i32_0 : i32, i32
  }
  func.func @transform_4(%arg0: i32, %arg1: i32) -> (i32, i32) {
    %c0_i32 = arith.constant 0 : i32
    %c0_i32_0 = arith.constant 0 : i32
    %c0_i32_1 = arith.constant 0 : i32
    return %c0_i32, %c0_i32_0 : i32, i32
  }
  func.func @transform_5(%arg0: i32, %arg1: i32) -> (i32, i32) {
    %c0_i32 = arith.constant 0 : i32
    %c0_i32_0 = arith.constant 0 : i32
    %c0_i32_1 = arith.constant 0 : i32
    return %c0_i32, %c0_i32_0 : i32, i32
  }
  func.func @transform_6(%arg0: i32, %arg1: i32) -> (i32, i32) {
    %c0_i32 = arith.constant 0 : i32
    %c0_i32_0 = arith.constant 0 : i32
    %c0_i32_1 = arith.constant 0 : i32
    return %c0_i32, %c0_i32_0 : i32, i32
  }
  func.func @transform_7(%arg0: i32, %arg1: i32) -> (i32, i32) {
    %c0_i32 = arith.constant 0 : i32
    %c0_i32_0 = arith.constant 0 : i32
    %c0_i32_1 = arith.constant 0 : i32
    return %c0_i32, %c0_i32_0 : i32, i32
  }
  func.func @transform_8(%arg0: i32, %arg1: i32) -> (i32, i32) {
    %c0_i32 = arith.constant 0 : i32
    %c0_i32_0 = arith.constant 0 : i32
    %c0_i32_1 = arith.constant 0 : i32
    return %c0_i32, %c0_i32_0 : i32, i32
  }
  func.func @transform_9(%arg0: i32, %arg1: i32) -> (i32, i32) {
    %c0_i32 = arith.constant 0 : i32
    %c0_i32_0 = arith.constant 0 : i32
    %c0_i32_1 = arith.constant 0 : i32
    return %c0_i32, %c0_i32_0 : i32, i32
  }
  func.func @transform_10(%arg0: i32, %arg1: i32) -> (i32, i32) {
    %c0_i32 = arith.constant 0 : i32
    %c0_i32_0 = arith.constant 0 : i32
    %c0_i32_1 = arith.constant 0 : i32
    return %c0_i32, %c0_i32_0 : i32, i32
  }
  func.func @transform_11(%arg0: i32, %arg1: i32) -> (i32, i32) {
    %c0_i32 = arith.constant 0 : i32
    %c0_i32_0 = arith.constant 0 : i32
    %c0_i32_1 = arith.constant 0 : i32
    return %c0_i32, %c0_i32_0 : i32, i32
  }
  func.func @transform_12(%arg0: i32, %arg1: i32) -> (i32, i32) {
    %c0_i32 = arith.constant 0 : i32
    %c0_i32_0 = arith.constant 0 : i32
    %c0_i32_1 = arith.constant 0 : i32
    return %c0_i32, %c0_i32_0 : i32, i32
  }
  func.func @transform_13(%arg0: i32, %arg1: i32) -> (i32, i32, i32) {
    %c0_i32 = arith.constant 0 : i32
    %c0_i32_0 = arith.constant 0 : i32
    return %arg0, %arg1, %c0_i32 : i32, i32, i32
  }
}

</mosaic_0001>

<llo_original>
// kernel: tpu_custom_call.1
$region0: #{tpu_custom_call.1}
  #allocation0 [shape = 'u32[]', space=smem, size = 0x4, offset = 0x4, fixed_abs, tag = 'smem constant byte address 0x4 - core index']
  #allocation1 [shape = 'u32[72,128]{1,0:T(1,128)}', space=vmem, size = 0x9000, scoped, tag = 'internal scratch']
  #allocation2 [shape = 'f32[8,32]{1,0:T(8,128)}', space=vmem, size = 0x1000, scoped, tag = 'scratch operand']
  #allocation3 [shape = 'f32[8,32]{1,0:T(8,128)}', space=vmem, size = 0x1000, scoped, tag = 'scratch operand']
  #allocation4 [shape = 'f32[8,32]{1,0:T(8,128)}', space=vmem, size = 0x1000, scoped, tag = 'scratch operand']
  #allocation5 [shape = 'f32[8,32]{1,0:T(8,128)}', space=vmem, size = 0x1000, scoped, tag = 'scratch operand']
  %s0 = inlined_call_operand.hbm [shape: f32[2,8,32], index: 0, kind: input, shape index: {}]
  %s1 = inlined_call_operand.hbm [shape: f32[2,8,32], index: 1, kind: input, shape index: {}]
  %s2 = inlined_call_operand.hbm [shape: f32[2,1,8], index: 2, kind: input, shape index: {}]
  %s3 = inlined_call_operand.vmem [shape: f32[1,32], index: 3, kind: input, shape index: {}]
  %s4 = inlined_call_operand.vmem [shape: f32[1,32], index: 4, kind: input, shape index: {}]
  %s5 = inlined_call_operand.hbm [shape: f32[32,32], index: 5, kind: input, shape index: {}]
  %s6 = inlined_call_operand.hbm [shape: f32[32,32], index: 6, kind: input, shape index: {}]
  %s7 = inlined_call_operand.hbm [shape: f32[32,32], index: 7, kind: input, shape index: {}]
  %s8 = inlined_call_operand.vmem [shape: f32[1,32], index: 8, kind: input, shape index: {}]
  %s9 = inlined_call_operand.vmem [shape: f32[1,32], index: 9, kind: input, shape index: {}]
  %s10 = inlined_call_operand.vmem [shape: f32[1,32], index: 10, kind: input, shape index: {}]
  %s11 = inlined_call_operand.hbm [shape: f32[32,32], index: 11, kind: input, shape index: {}]
  %s12 = inlined_call_operand.vmem [shape: f32[1,32], index: 12, kind: input, shape index: {}]
  %s13 = inlined_call_operand.hbm [shape: f32[2,8,32], index: 13, kind: output, shape index: {}]
  %s14 = sld [smem:[#allocation0]]
  $region117: #{tpu_custom_call.1} parent=0
    _
  %s16 = ssub.s32 1, %s14
  %s17 = scalar_select 0, %s16, %s14
  $region1: #{tpu_custom_call.1} parent=0
    #allocation6 [shape = 'u8[8192]{0}', space=vmem, size = 0x2000, scoped, tag = 'input window, operand 0']
    #allocation7 [shape = 's32[2]{0}', space=sflag, size = 0x8, scoped, tag = 'scoped memory for tpu_custom_call.1']
    #allocation8 [shape = 's32[2]{0}', space=sflag, size = 0x8, scoped, tag = 'scoped memory for tpu_custom_call.1']
    #allocation9 [shape = 'u8[8192]{0}', space=vmem, size = 0x2000, scoped, tag = 'input window, operand 1']
    #allocation10 [shape = 's32[2]{0}', space=sflag, size = 0x8, scoped, tag = 'scoped memory for tpu_custom_call.1']
    #allocation11 [shape = 'u8[1024]{0}', space=vmem, size = 0x400, scoped, tag = 'input window, operand 2']
    #allocation12 [shape = 'u8[16384]{0}', space=vmem, size = 0x4000, scoped, tag = 'input window, operand 5, single buffered']
    #allocation13 [shape = 's32[1]{0}', space=sflag, size = 0x4, scoped, tag = 'scoped memory for tpu_custom_call.1']
    #allocation14 [shape = 'u8[16384]{0}', space=vmem, size = 0x4000, scoped, tag = 'input window, operand 6, single buffered']
    #allocation15 [shape = 'u8[16384]{0}', space=vmem, size = 0x4000, scoped, tag = 'input window, operand 7, single buffered']
    #allocation16 [shape = 's32[1]{0}', space=sflag, size = 0x4, scoped, tag = 'scoped memory for tpu_custom_call.1']
    #allocation17 [shape = 'u8[16384]{0}', space=vmem, size = 0x4000, scoped, tag = 'input window, operand 11, single buffered']
    #allocation18 [shape = 'u8[8192]{0}', space=vmem, size = 0x2000, scoped, tag = 'output window, operand 0']
    %18 = vsyncpa [#allocation7], 0
    %s19 = scalar_lea.sflag [#allocation7], 1
    %20 = vsyncpa %s19, 0
    %21 = vsyncpa [#allocation10], 0
    %s22 = scalar_lea.sflag [#allocation10], 1
    %23 = vsyncpa %s22, 0
    %24 = vsyncpa [#allocation13], 0
    %25 = vsyncpa [#allocation16], 0
    %26 = vsyncpa [#allocation8], 0
    %s27 = scalar_lea.sflag [#allocation8], 1
    %28 = vsyncpa %s27, 0
    loop: start=0, step=1, limit=4
    $region2: #{tpu_custom_call.1} parent=1 // loop_pre_header
      _
    $region3: #{tpu_custom_call.1} parent=1 // loop_header
      %s30 = sphi 0, %s34
      %p31 = scmp.ge.s32.totalorder %s30, 4
      %s37 = sphi 0, %s49
      %s38 = sphi 0, %s45
      %s39 = sphi 0, %s37
      %s40 = sphi 0, %s38
      %s41 = sphi 0, %s39
      %s42 = sphi 0, %s40
      %s54 = sphi 0, %s56
      %s57 = sphi 0, %s54
      %s58 = sphi 0, %s57
      %s74 = sphi 0, %s58
      %s80 = sphi 0, %s82
      %s83 = sphi 0, %s80
      %s84 = sphi 0, %s83
      %s100 = sphi 0, %s84
      %s106 = sphi 0, %s108
      %s109 = sphi 0, %s106
      %s110 = sphi 0, %s109
      %s126 = sphi 0, %s110
      %s130 = sphi 0, %s130
      %s132 = sphi 0, %s130
      %s133 = sphi 0, %s132
      %s147 = sphi 0, %s133
      %s151 = sphi 0, %s151
      %s153 = sphi 0, %s151
      %s154 = sphi 0, %s153
      %s168 = sphi 0, %s154
      %s172 = sphi 0, %s172
      %s174 = sphi 0, %s172
      %s175 = sphi 0, %s174
      %s189 = sphi 0, %s175
      %s193 = sphi 0, %s193
      %s195 = sphi 0, %s193
      %s196 = sphi 0, %s195
      %s210 = sphi 0, %s196
      %s214 = sphi 0, %s214
      %s216 = sphi 0, %s214
      %s217 = sphi 0, %s216
      %s231 = sphi 0, %s217
      %s235 = sphi 0, %s235
      %s237 = sphi 0, %s235
      %s238 = sphi 0, %s237
      %s252 = sphi 0, %s238
      %s256 = sphi 0, %s256
      %s258 = sphi 0, %s256
      %s259 = sphi 0, %s258
      %s273 = sphi 0, %s259
      %s277 = sphi 0, %s277
      %s279 = sphi 0, %s277
      %s280 = sphi 0, %s279
      %s294 = sphi 0, %s280
      %s298 = sphi 0, %s298
      %s300 = sphi 0, %s298
      %s301 = sphi 0, %s300
      %s315 = sphi 0, %s301
      %s319 = sphi 0, %s319
      %s321 = sphi 0, %s319
      %s322 = sphi 0, %s321
      %s336 = sphi 0, %s322
      %s344 = sphi 0, %s346
      %s347 = sphi 0, %s344
      %s348 = sphi 0, %s347
      %s364 = sphi 0, %s348
    $region4: #{tpu_custom_call.1} parent=1 // loop_header_branch
      %33 = sbr.rel (%p31) target = $region8
    $region5: #{tpu_custom_call.1} parent=1 // loop_body
      %s35 = ssub.s32 %s30, 1
      %s36 = ssub.s32 %s30, 2
      %s43 = sadd.s32 1, %s38
      %p44 = scmp.ge.s32.totalorder %s43, 1
      %s45 = scalar_select %p44, 0, %s43
      %s46 = sadd.s32 1, %s37
      %s47 = scalar_select %p44, %s46, %s37
      %p48 = scmp.ge.s32.totalorder %s47, 2
      %s49 = scalar_select %p48, 0, %s47
      %s50 = ssub.s32 %s37, %s49
      %s51 = ssub.s32 %s38, %s45
      %s52 = sor.u32 %s50, %s51
      %p53 = scmp.eq.s32.totalorder %s52, 0
      %s55 = sadd.s32 %s54, 1
      %s56 = scalar_select %p53, %s54, %s55
      %p59 = pneg %p53
      %p60 = scmp.eq.s32.totalorder %s30, 1
      %p61 = por %p59, %p60
      %p62 = scmp.ne.s32.totalorder %s54, %s57
      %p63 = scmp.eq.s32.totalorder %s30, 0
      %p64 = por %p62, %p63
      %p65 = scmp.ne.s32.totalorder %s54, %s57
      %p66 = scmp.eq.s32.totalorder %s35, 1
      %p67 = por %p65, %p66
      %p68 = scmp.ne.s32.totalorder %s57, %s58
      %p69 = scmp.eq.s32.totalorder %s35, 0
      %p70 = por %p68, %p69
      %p71 = scmp.ne.s32.totalorder %s57, %s58
      %p72 = scmp.eq.s32.totalorder %s36, 1
      %p73 = por %p71, %p72
      %p75 = scmp.ne.s32.totalorder %s58, %s74
      %p76 = scmp.eq.s32.totalorder %s36, 0
      %p77 = por %p75, %p76
      %s78 = ssub.s32 %s37, %s49
      %p79 = scmp.eq.s32.totalorder %s78, 0
      %s81 = sadd.s32 %s80, 1
      %s82 = scalar_select %p79, %s80, %s81
      %p85 = pneg %p79
      %p86 = scmp.eq.s32.totalorder %s30, 1
      %p87 = por %p85, %p86
      %p88 = scmp.ne.s32.totalorder %s80, %s83
      %p89 = scmp.eq.s32.totalorder %s30, 0
      %p90 = por %p88, %p89
      %p91 = scmp.ne.s32.totalorder %s80, %s83
      %p92 = scmp.eq.s32.totalorder %s35, 1
      %p93 = por %p91, %p92
      %p94 = scmp.ne.s32.totalorder %s83, %s84
      %p95 = scmp.eq.s32.totalorder %s35, 0
      %p96 = por %p94, %p95
      %p97 = scmp.ne.s32.totalorder %s83, %s84
      %p98 = scmp.eq.s32.totalorder %s36, 1
      %p99 = por %p97, %p98
      %p101 = scmp.ne.s32.totalorder %s84, %s100
      %p102 = scmp.eq.s32.totalorder %s36, 0
      %p103 = por %p101, %p102
      %s104 = ssub.s32 %s37, %s49
      %p105 = scmp.eq.s32.totalorder %s104, 0
      %s107 = sadd.s32 %s106, 1
      %s108 = scalar_select %p105, %s106, %s107
      %p111 = pneg %p105
      %p112 = scmp.eq.s32.totalorder %s30, 1
      %p113 = por %p111, %p112
      %p114 = scmp.ne.s32.totalorder %s106, %s109
      %p115 = scmp.eq.s32.totalorder %s30, 0
      %p116 = por %p114, %p115
      %p117 = scmp.ne.s32.totalorder %s106, %s109
      %p118 = scmp.eq.s32.totalorder %s35, 1
      %p119 = por %p117, %p118
      %p120 = scmp.ne.s32.totalorder %s109, %s110
      %p121 = scmp.eq.s32.totalorder %s35, 0
      %p122 = por %p120, %p121
      %p123 = scmp.ne.s32.totalorder %s109, %s110
      %p124 = scmp.eq.s32.totalorder %s36, 1
      %p125 = por %p123, %p124
      %p127 = scmp.ne.s32.totalorder %s110, %s126
      %p128 = scmp.eq.s32.totalorder %s36, 0
      %p129 = por %p127, %p128
      %s131 = sadd.s32 %s130, 1
      %p134 = scmp.eq.s32.totalorder %s30, 1
      %p135 = scmp.ne.s32.totalorder %s130, %s132
      %p136 = scmp.eq.s32.totalorder %s30, 0
      %p137 = por %p135, %p136
      %p138 = scmp.ne.s32.totalorder %s130, %s132
      %p139 = scmp.eq.s32.totalorder %s35, 1
      %p140 = por %p138, %p139
      %p141 = scmp.ne.s32.totalorder %s132, %s133
      %p142 = scmp.eq.s32.totalorder %s35, 0
      %p143 = por %p141, %p142
      %p144 = scmp.ne.s32.totalorder %s132, %s133
      %p145 = scmp.eq.s32.totalorder %s36, 1
      %p146 = por %p144, %p145
      %p148 = scmp.ne.s32.totalorder %s133, %s147
      %p149 = scmp.eq.s32.totalorder %s36, 0
      %p150 = por %p148, %p149
      %s152 = sadd.s32 %s151, 1
      %p155 = scmp.eq.s32.totalorder %s30, 1
      %p156 = scmp.ne.s32.totalorder %s151, %s153
      %p157 = scmp.eq.s32.totalorder %s30, 0
      %p158 = por %p156, %p157
      %p159 = scmp.ne.s32.totalorder %s151, %s153
      %p160 = scmp.eq.s32.totalorder %s35, 1
      %p161 = por %p159, %p160
      %p162 = scmp.ne.s32.totalorder %s153, %s154
      %p163 = scmp.eq.s32.totalorder %s35, 0
      %p164 = por %p162, %p163
      %p165 = scmp.ne.s32.totalorder %s153, %s154
      %p166 = scmp.eq.s32.totalorder %s36, 1
      %p167 = por %p165, %p166
      %p169 = scmp.ne.s32.totalorder %s154, %s168
      %p170 = scmp.eq.s32.totalorder %s36, 0
      %p171 = por %p169, %p170
      %s173 = sadd.s32 %s172, 1
      %p176 = scmp.eq.s32.totalorder %s30, 1
      %p177 = scmp.ne.s32.totalorder %s172, %s174
      %p178 = scmp.eq.s32.totalorder %s30, 0
      %p179 = por %p177, %p178
      %p180 = scmp.ne.s32.totalorder %s172, %s174
      %p181 = scmp.eq.s32.totalorder %s35, 1
      %p182 = por %p180, %p181
      %p183 = scmp.ne.s32.totalorder %s174, %s175
      %p184 = scmp.eq.s32.totalorder %s35, 0
      %p185 = por %p183, %p184
      %p186 = scmp.ne.s32.totalorder %s174, %s175
      %p187 = scmp.eq.s32.totalorder %s36, 1
      %p188 = por %p186, %p187
      %p190 = scmp.ne.s32.totalorder %s175, %s189
      %p191 = scmp.eq.s32.totalorder %s36, 0
      %p192 = por %p190, %p191
      %s194 = sadd.s32 %s193, 1
      %p197 = scmp.eq.s32.totalorder %s30, 1
      %p198 = scmp.ne.s32.totalorder %s193, %s195
      %p199 = scmp.eq.s32.totalorder %s30, 0
      %p200 = por %p198, %p199
      %p201 = scmp.ne.s32.totalorder %s193, %s195
      %p202 = scmp.eq.s32.totalorder %s35, 1
      %p203 = por %p201, %p202
      %p204 = scmp.ne.s32.totalorder %s195, %s196
      %p205 = scmp.eq.s32.totalorder %s35, 0
      %p206 = por %p204, %p205
      %p207 = scmp.ne.s32.totalorder %s195, %s196
      %p208 = scmp.eq.s32.totalorder %s36, 1
      %p209 = por %p207, %p208
      %p211 = scmp.ne.s32.totalorder %s196, %s210
      %p212 = scmp.eq.s32.totalorder %s36, 0
      %p213 = por %p211, %p212
      %s215 = sadd.s32 %s214, 1
      %p218 = scmp.eq.s32.totalorder %s30, 1
      %p219 = scmp.ne.s32.totalorder %s214, %s216
      %p220 = scmp.eq.s32.totalorder %s30, 0
      %p221 = por %p219, %p220
      %p222 = scmp.ne.s32.totalorder %s214, %s216
      %p223 = scmp.eq.s32.totalorder %s35, 1
      %p224 = por %p222, %p223
      %p225 = scmp.ne.s32.totalorder %s216, %s217
      %p226 = scmp.eq.s32.totalorder %s35, 0
      %p227 = por %p225, %p226
      %p228 = scmp.ne.s32.totalorder %s216, %s217
      %p229 = scmp.eq.s32.totalorder %s36, 1
      %p230 = por %p228, %p229
      %p232 = scmp.ne.s32.totalorder %s217, %s231
      %p233 = scmp.eq.s32.totalorder %s36, 0
      %p234 = por %p232, %p233
      %s236 = sadd.s32 %s235, 1
      %p239 = scmp.eq.s32.totalorder %s30, 1
      %p240 = scmp.ne.s32.totalorder %s235, %s237
      %p241 = scmp.eq.s32.totalorder %s30, 0
      %p242 = por %p240, %p241
      %p243 = scmp.ne.s32.totalorder %s235, %s237
      %p244 = scmp.eq.s32.totalorder %s35, 1
      %p245 = por %p243, %p244
      %p246 = scmp.ne.s32.totalorder %s237, %s238
      %p247 = scmp.eq.s32.totalorder %s35, 0
      %p248 = por %p246, %p247
      %p249 = scmp.ne.s32.totalorder %s237, %s238
      %p250 = scmp.eq.s32.totalorder %s36, 1
      %p251 = por %p249, %p250
      %p253 = scmp.ne.s32.totalorder %s238, %s252
      %p254 = scmp.eq.s32.totalorder %s36, 0
      %p255 = por %p253, %p254
      %s257 = sadd.s32 %s256, 1
      %p260 = scmp.eq.s32.totalorder %s30, 1
      %p261 = scmp.ne.s32.totalorder %s256, %s258
      %p262 = scmp.eq.s32.totalorder %s30, 0
      %p263 = por %p261, %p262
      %p264 = scmp.ne.s32.totalorder %s256, %s258
      %p265 = scmp.eq.s32.totalorder %s35, 1
      %p266 = por %p264, %p265
      %p267 = scmp.ne.s32.totalorder %s258, %s259
      %p268 = scmp.eq.s32.totalorder %s35, 0
      %p269 = por %p267, %p268
      %p270 = scmp.ne.s32.totalorder %s258, %s259
      %p271 = scmp.eq.s32.totalorder %s36, 1
      %p272 = por %p270, %p271
      %p274 = scmp.ne.s32.totalorder %s259, %s273
      %p275 = scmp.eq.s32.totalorder %s36, 0
      %p276 = por %p274, %p275
      %s278 = sadd.s32 %s277, 1
      %p281 = scmp.eq.s32.totalorder %s30, 1
      %p282 = scmp.ne.s32.totalorder %s277, %s279
      %p283 = scmp.eq.s32.totalorder %s30, 0
      %p284 = por %p282, %p283
      %p285 = scmp.ne.s32.totalorder %s277, %s279
      %p286 = scmp.eq.s32.totalorder %s35, 1
      %p287 = por %p285, %p286
      %p288 = scmp.ne.s32.totalorder %s279, %s280
      %p289 = scmp.eq.s32.totalorder %s35, 0
      %p290 = por %p288, %p289
      %p291 = scmp.ne.s32.totalorder %s279, %s280
      %p292 = scmp.eq.s32.totalorder %s36, 1
      %p293 = por %p291, %p292
      %p295 = scmp.ne.s32.totalorder %s280, %s294
      %p296 = scmp.eq.s32.totalorder %s36, 0
      %p297 = por %p295, %p296
      %s299 = sadd.s32 %s298, 1
      %p302 = scmp.eq.s32.totalorder %s30, 1
      %p303 = scmp.ne.s32.totalorder %s298, %s300
      %p304 = scmp.eq.s32.totalorder %s30, 0
      %p305 = por %p303, %p304
      %p306 = scmp.ne.s32.totalorder %s298, %s300
      %p307 = scmp.eq.s32.totalorder %s35, 1
      %p308 = por %p306, %p307
      %p309 = scmp.ne.s32.totalorder %s300, %s301
      %p310 = scmp.eq.s32.totalorder %s35, 0
      %p311 = por %p309, %p310
      %p312 = scmp.ne.s32.totalorder %s300, %s301
      %p313 = scmp.eq.s32.totalorder %s36, 1
      %p314 = por %p312, %p313
      %p316 = scmp.ne.s32.totalorder %s301, %s315
      %p317 = scmp.eq.s32.totalorder %s36, 0
      %p318 = por %p316, %p317
      %s320 = sadd.s32 %s319, 1
      %p323 = scmp.eq.s32.totalorder %s30, 1
      %p324 = scmp.ne.s32.totalorder %s319, %s321
      %p325 = scmp.eq.s32.totalorder %s30, 0
      %p326 = por %p324, %p325
      %p327 = scmp.ne.s32.totalorder %s319, %s321
      %p328 = scmp.eq.s32.totalorder %s35, 1
      %p329 = por %p327, %p328
      %p330 = scmp.ne.s32.totalorder %s321, %s322
      %p331 = scmp.eq.s32.totalorder %s35, 0
      %p332 = por %p330, %p331
      %p333 = scmp.ne.s32.totalorder %s321, %s322
      %p334 = scmp.eq.s32.totalorder %s36, 1
      %p335 = por %p333, %p334
      %p337 = scmp.ne.s32.totalorder %s322, %s336
      %p338 = scmp.eq.s32.totalorder %s36, 0
      %p339 = por %p337, %p338
      %s340 = ssub.s32 %s37, %s49
      %s341 = ssub.s32 %s38, %s45
      %s342 = sor.u32 %s340, %s341
      %p343 = scmp.eq.s32.totalorder %s342, 0
      %s345 = sadd.s32 %s344, 1
      %s346 = scalar_select %p343, %s344, %s345
      %p349 = pneg %p343
      %p350 = scmp.eq.s32.totalorder %s30, 1
      %p351 = por %p349, %p350
      %p352 = scmp.ne.s32.totalorder %s344, %s347
      %p353 = scmp.eq.s32.totalorder %s30, 0
      %p354 = por %p352, %p353
      %p355 = scmp.ne.s32.totalorder %s344, %s347
      %p356 = scmp.eq.s32.totalorder %s35, 1
      %p357 = por %p355, %p356
      %p358 = scmp.ne.s32.totalorder %s347, %s348
      %p359 = scmp.eq.s32.totalorder %s35, 0
      %p360 = por %p358, %p359
      %p361 = scmp.ne.s32.totalorder %s347, %s348
      %p362 = scmp.eq.s32.totalorder %s36, 1
      %p363 = por %p361, %p362
      %p365 = scmp.ne.s32.totalorder %s348, %s364
      %p366 = scmp.eq.s32.totalorder %s36, 0
      %p367 = por %p365, %p366
      %p368 = scmp.le.s32.totalorder 1, %s30
      %p369 = scmp.lt.s32.totalorder %s30, 3
      %p370 = pnand %p368, %p369
      %p371 = pneg %p370
      // Predicated region
      $region9: #{tpu_custom_call.1} parent=5 // pred_check
        _
      $region10: #{tpu_custom_call.1} parent=5 // pred_check_branch
        %373 = sbr.rel (%p370) target = $region12
      $region11: #{tpu_custom_call.1} parent=5 // pred_region
        %s374 = ssub.s32 %s30, 1
        // Predicated region
        $region13: #{tpu_custom_call.1} parent=11 // pred_check
          %p375 = pneg %p143
        $region14: #{tpu_custom_call.1} parent=11 // pred_check_branch
          %377 = sbr.rel (%p375) target = $region16
        $region15: #{tpu_custom_call.1} parent=11 // pred_region
          _
        $region16: #{tpu_custom_call.1} parent=11 // pred_fallthru
          _
        // Predicated region
        $region17: #{tpu_custom_call.1} parent=11 // pred_check
          %p378 = pneg %p164
        $region18: #{tpu_custom_call.1} parent=11 // pred_check_branch
          %380 = sbr.rel (%p378) target = $region20
        $region19: #{tpu_custom_call.1} parent=11 // pred_region
          _
        $region20: #{tpu_custom_call.1} parent=11 // pred_fallthru
          _
        // Predicated region
        $region21: #{tpu_custom_call.1} parent=11 // pred_check
          %p381 = pneg %p185
        $region22: #{tpu_custom_call.1} parent=11 // pred_check_branch
          %383 = sbr.rel (%p381) target = $region24
        $region23: #{tpu_custom_call.1} parent=11 // pred_region
          %385 = vsyncadd [#allocation13], 0
          %s386 = sshll.u32 %s5, 4
          %s387 = int_to_ptr.hbm [resolvable:$true] %s386
          %s388 = sshll.u32 [#allocation12], 4
          %s389 = int_to_ptr.vmem [resolvable:$true] %s388
          %394 = dma.hbm_to_vmem [thread:$0]  %s387, 512, %s389, [#allocation13], 128, 128, 8
        $region24: #{tpu_custom_call.1} parent=11 // pred_fallthru
          _
        // Predicated region
        $region25: #{tpu_custom_call.1} parent=11 // pred_check
          %p395 = pneg %p206
        $region26: #{tpu_custom_call.1} parent=11 // pred_check_branch
          %397 = sbr.rel (%p395) target = $region28
        $region27: #{tpu_custom_call.1} parent=11 // pred_region
          %399 = vsyncadd [#allocation13], 0
          %s400 = sshll.u32 %s6, 4
          %s401 = int_to_ptr.hbm [resolvable:$true] %s400
          %s402 = sshll.u32 [#allocation14], 4
          %s403 = int_to_ptr.vmem [resolvable:$true] %s402
          %408 = dma.hbm_to_vmem [thread:$0]  %s401, 512, %s403, [#allocation13], 128, 128, 8
        $region28: #{tpu_custom_call.1} parent=11 // pred_fallthru
          _
        // Predicated region
        $region29: #{tpu_custom_call.1} parent=11 // pred_check
          %p409 = pneg %p227
        $region30: #{tpu_custom_call.1} parent=11 // pred_check_branch
          %411 = sbr.rel (%p409) target = $region32
        $region31: #{tpu_custom_call.1} parent=11 // pred_region
          %413 = vsyncadd [#allocation16], 0
          %s414 = sshll.u32 %s7, 4
          %s415 = int_to_ptr.hbm [resolvable:$true] %s414
          %s416 = sshll.u32 [#allocation15], 4
          %s417 = int_to_ptr.vmem [resolvable:$true] %s416
          %422 = dma.hbm_to_vmem [thread:$0]  %s415, 512, %s417, [#allocation16], 128, 128, 8
        $region32: #{tpu_custom_call.1} parent=11 // pred_fallthru
          _
        // Predicated region
        $region33: #{tpu_custom_call.1} parent=11 // pred_check
          %p423 = pneg %p248
        $region34: #{tpu_custom_call.1} parent=11 // pred_check_branch
          %425 = sbr.rel (%p423) target = $region36
        $region35: #{tpu_custom_call.1} parent=11 // pred_region
          _
        $region36: #{tpu_custom_call.1} parent=11 // pred_fallthru
          _
        // Predicated region
        $region37: #{tpu_custom_call.1} parent=11 // pred_check
          %p426 = pneg %p269
        $region38: #{tpu_custom_call.1} parent=11 // pred_check_branch
          %428 = sbr.rel (%p426) target = $region40
        $region39: #{tpu_custom_call.1} parent=11 // pred_region
          _
        $region40: #{tpu_custom_call.1} parent=11 // pred_fallthru
          _
        // Predicated region
        $region41: #{tpu_custom_call.1} parent=11 // pred_check
          %p429 = pneg %p290
        $region42: #{tpu_custom_call.1} parent=11 // pred_check_branch
          %431 = sbr.rel (%p429) target = $region44
        $region43: #{tpu_custom_call.1} parent=11 // pred_region
          _
        $region44: #{tpu_custom_call.1} parent=11 // pred_fallthru
          _
        // Predicated region
        $region45: #{tpu_custom_call.1} parent=11 // pred_check
          %p432 = pneg %p311
        $region46: #{tpu_custom_call.1} parent=11 // pred_check_branch
          %434 = sbr.rel (%p432) target = $region48
        $region47: #{tpu_custom_call.1} parent=11 // pred_region
          %436 = vsyncadd [#allocation16], 0
          %s437 = sshll.u32 %s11, 4
          %s438 = int_to_ptr.hbm [resolvable:$true] %s437
          %s439 = sshll.u32 [#allocation17], 4
          %s440 = int_to_ptr.vmem [resolvable:$true] %s439
          %445 = dma.hbm_to_vmem [thread:$0]  %s438, 512, %s440, [#allocation16], 128, 128, 8
        $region48: #{tpu_custom_call.1} parent=11 // pred_fallthru
          _
        // Predicated region
        $region49: #{tpu_custom_call.1} parent=11 // pred_check
          %p446 = pneg %p332
        $region50: #{tpu_custom_call.1} parent=11 // pred_check_branch
          %448 = sbr.rel (%p446) target = $region52
        $region51: #{tpu_custom_call.1} parent=11 // pred_region
          _
        $region52: #{tpu_custom_call.1} parent=11 // pred_fallthru
          _
      $region12: #{tpu_custom_call.1} parent=5 // pred_fallthru
        _
      %p449 = scmp.lt.s32.totalorder %s30, 2
      // Predicated region
      $region53: #{tpu_custom_call.1} parent=5 // pred_check
        %p450 = pneg %p449
      $region54: #{tpu_custom_call.1} parent=5 // pred_check_branch
        %452 = sbr.rel (%p450) target = $region56
      $region55: #{tpu_custom_call.1} parent=5 // pred_region
        // Predicated region
        $region57: #{tpu_custom_call.1} parent=55 // pred_check
          %p453 = pneg %p64
        $region58: #{tpu_custom_call.1} parent=55 // pred_check_branch
          %455 = sbr.rel (%p453) target = $region60
        $region59: #{tpu_custom_call.1} parent=55 // pred_region
          %s456 = sand.u32 %s54, 1
          %s457 = scalar_lea.sflag [#allocation7], %s456
          %s458 = sand.u32 %s54, 1
          %s459 = smul.addr %s458, 8
          %s460 = scalar_lea.vmem [#allocation6], %s459
          %462 = vsyncadd %s457, 0
          %s463 = sadd.s32 %s38, %s37
          %s464 = smul.addr %s463, 8
          %s465 = scalar_lea.hbm %s0, %s464
          %s467 = sshll.u32 %s465, 4
          %s468 = int_to_ptr.hbm [resolvable:$true] %s467
          %s469 = sshll.u32 %s460, 4
          %s470 = int_to_ptr.vmem [resolvable:$true] %s469
          %472 = dma.hbm_to_vmem [thread:$0]  %s468, 128, %s470, %s457
        $region60: #{tpu_custom_call.1} parent=55 // pred_fallthru
          _
        // Predicated region
        $region61: #{tpu_custom_call.1} parent=55 // pred_check
          %p473 = pneg %p90
        $region62: #{tpu_custom_call.1} parent=55 // pred_check_branch
          %475 = sbr.rel (%p473) target = $region64
        $region63: #{tpu_custom_call.1} parent=55 // pred_region
          %s476 = sand.u32 %s30, 1
          %s477 = scalar_lea.sflag [#allocation10], %s476
          %s478 = sand.u32 %s80, 1
          %s479 = smul.addr %s478, 8
          %s480 = scalar_lea.vmem [#allocation9], %s479
          %482 = vsyncadd %s477, 0
          %s483 = smul.addr %s37, 8
          %s484 = scalar_lea.hbm %s1, %s483
          %s486 = sshll.u32 %s484, 4
          %s487 = int_to_ptr.hbm [resolvable:$true] %s486
          %s488 = sshll.u32 %s480, 4
          %s489 = int_to_ptr.vmem [resolvable:$true] %s488
          %491 = dma.hbm_to_vmem [thread:$0]  %s487, 128, %s489, %s477
        $region64: #{tpu_custom_call.1} parent=55 // pred_fallthru
          _
        // Predicated region
        $region65: #{tpu_custom_call.1} parent=55 // pred_check
          %p492 = pneg %p116
        $region66: #{tpu_custom_call.1} parent=55 // pred_check_branch
          %494 = sbr.rel (%p492) target = $region68
        $region67: #{tpu_custom_call.1} parent=55 // pred_region
          %s495 = sand.u32 %s30, 1
          %s496 = scalar_lea.sflag [#allocation10], %s495
          %s497 = sand.u32 %s106, 1
          %s498 = scalar_lea.vmem [#allocation11], %s497
          %500 = vsyncadd %s496, 0
          %s501 = scalar_lea.hbm %s2, %s37
          %s503 = sshll.u32 %s501, 4
          %s504 = int_to_ptr.hbm [resolvable:$true] %s503
          %s505 = sshll.u32 %s498, 4
          %s506 = int_to_ptr.vmem [resolvable:$true] %s505
          %508 = dma.hbm_to_vmem [thread:$0]  %s504, 16, %s506, %s496
        $region68: #{tpu_custom_call.1} parent=55 // pred_fallthru
          _
      $region56: #{tpu_custom_call.1} parent=5 // pred_fallthru
        _
      %p509 = scmp.le.s32.totalorder 1, %s30
      %p510 = scmp.lt.s32.totalorder %s30, 3
      %p511 = pnand %p509, %p510
      %p512 = pneg %p511
      // Predicated region
      $region69: #{tpu_custom_call.1} parent=5 // pred_check
        _
      $region70: #{tpu_custom_call.1} parent=5 // pred_check_branch
        %514 = sbr.rel (%p511) target = $region72
      $region71: #{tpu_custom_call.1} parent=5 // pred_region
        %s515 = ssub.s32 %s30, 1
        %s516 = sand.u32 %s57, 1
        %s517 = scalar_lea.sflag [#allocation7], %s516
        %s518 = sand.u32 %s57, 1
        %s519 = smul.addr %s518, 8
        %s520 = scalar_lea.vmem [#allocation6], %s519
        // Predicated region
        $region73: #{tpu_custom_call.1} parent=71 // pred_check
          %p521 = pneg %p70
        $region74: #{tpu_custom_call.1} parent=71 // pred_check_branch
          %523 = sbr.rel (%p521) target = $region76
        $region75: #{tpu_custom_call.1} parent=71 // pred_region
          %525 = dma.done %s517, 128
        $region76: #{tpu_custom_call.1} parent=71 // pred_fallthru
          _
        %s526 = sand.u32 %s35, 1
        %s527 = scalar_lea.sflag [#allocation10], %s526
        %s528 = sand.u32 %s83, 1
        %s529 = smul.addr %s528, 8
        %s530 = scalar_lea.vmem [#allocation9], %s529
        // Predicated region
        $region77: #{tpu_custom_call.1} parent=71 // pred_check
          %p531 = pneg %p96
        $region78: #{tpu_custom_call.1} parent=71 // pred_check_branch
          %533 = sbr.rel (%p531) target = $region80
        $region79: #{tpu_custom_call.1} parent=71 // pred_region
          %535 = dma.done %s527, 128
        $region80: #{tpu_custom_call.1} parent=71 // pred_fallthru
          _
        %s536 = sand.u32 %s35, 1
        %s537 = scalar_lea.sflag [#allocation10], %s536
        %s538 = sand.u32 %s109, 1
        %s539 = scalar_lea.vmem [#allocation11], %s538
        // Predicated region
        $region81: #{tpu_custom_call.1} parent=71 // pred_check
          %p540 = pneg %p122
        $region82: #{tpu_custom_call.1} parent=71 // pred_check_branch
          %542 = sbr.rel (%p540) target = $region84
        $region83: #{tpu_custom_call.1} parent=71 // pred_region
          %544 = dma.done %s537, 16
        $region84: #{tpu_custom_call.1} parent=71 // pred_fallthru
          _
        // Predicated region
        $region85: #{tpu_custom_call.1} parent=71 // pred_check
          %p545 = pneg %p185
        $region86: #{tpu_custom_call.1} parent=71 // pred_check_branch
          %547 = sbr.rel (%p545) target = $region88
        $region87: #{tpu_custom_call.1} parent=71 // pred_region
          %549 = dma.done [#allocation13], 512
        $region88: #{tpu_custom_call.1} parent=71 // pred_fallthru
          _
        // Predicated region
        $region89: #{tpu_custom_call.1} parent=71 // pred_check
          %p550 = pneg %p206
        $region90: #{tpu_custom_call.1} parent=71 // pred_check_branch
          %552 = sbr.rel (%p550) target = $region92
        $region91: #{tpu_custom_call.1} parent=71 // pred_region
          %554 = dma.done [#allocation13], 512
        $region92: #{tpu_custom_call.1} parent=71 // pred_fallthru
          _
        // Predicated region
        $region93: #{tpu_custom_call.1} parent=71 // pred_check
          %p555 = pneg %p227
        $region94: #{tpu_custom_call.1} parent=71 // pred_check_branch
          %557 = sbr.rel (%p555) target = $region96
        $region95: #{tpu_custom_call.1} parent=71 // pred_region
          %559 = dma.done [#allocation16], 512
        $region96: #{tpu_custom_call.1} parent=71 // pred_fallthru
          _
        // Predicated region
        $region97: #{tpu_custom_call.1} parent=71 // pred_check
          %p560 = pneg %p311
        $region98: #{tpu_custom_call.1} parent=71 // pred_check_branch
          %562 = sbr.rel (%p560) target = $region100
        $region99: #{tpu_custom_call.1} parent=71 // pred_region
          %564 = dma.done [#allocation16], 512
        $region100: #{tpu_custom_call.1} parent=71 // pred_fallthru
          _
        %s565 = sand.u32 %s57, 1
        %s566 = scalar_lea.sflag [#allocation7], %s565
        %s567 = sand.u32 %s57, 1
        %s568 = smul.addr %s567, 8
        %s569 = scalar_lea.vmem [#allocation6], %s568
        %p570 = pneg %p70
        %p571 = pneg %p67
        %s572 = sand.u32 %s35, 1
        %s573 = scalar_lea.sflag [#allocation10], %s572
        %s574 = sand.u32 %s83, 1
        %s575 = smul.addr %s574, 8
        %s576 = scalar_lea.vmem [#allocation9], %s575
        %p577 = pneg %p96
        %p578 = pneg %p93
        %s579 = sand.u32 %s35, 1
        %s580 = scalar_lea.sflag [#allocation10], %s579
        %s581 = sand.u32 %s109, 1
        %s582 = scalar_lea.vmem [#allocation11], %s581
        %p583 = pneg %p122
        %p584 = pneg %p119
        %p585 = pneg %p143
        %p586 = pneg %p140
        %p587 = pneg %p164
        %p588 = pneg %p161
        %p589 = pneg %p185
        %p590 = pneg %p182
        %p591 = pneg %p206
        %p592 = pneg %p203
        %p593 = pneg %p227
        %p594 = pneg %p224
        %p595 = pneg %p248
        %p596 = pneg %p245
        %p597 = pneg %p269
        %p598 = pneg %p266
        %p599 = pneg %p290
        %p600 = pneg %p287
        %p601 = pneg %p311
        %p602 = pneg %p308
        %p603 = pneg %p332
        %p604 = pneg %p329
        %p605 = pneg %p360
        %p606 = pneg %p357
        %s607 = sand.u32 %s347, 1
        %s608 = scalar_lea.sflag [#allocation8], %s607
        %s609 = sand.u32 %s347, 1
        %s610 = smul.addr %s609, 8
        %s611 = scalar_lea.vmem [#allocation18], %s610
        %p612 = scmp.eq.s32.totalorder %s40, 0
        // Predicated region
        $region101: #{tpu_custom_call.1} parent=71 // pred_check
          %p613 = pneg %p612
        $region102: #{tpu_custom_call.1} parent=71 // pred_check_branch
          %615 = sbr.rel (%p613) target = $region104
        $region103: #{tpu_custom_call.1} parent=71 // pred_region
          %v616 = vld [vmem:[%s530] sm:$0xff]
          %v617 = vld [vmem:[%s3] sm:$0x1]
          %v618 = vld [vmem:[%s4] sm:$0x1]
          %vm619 = vcmask 261120
          %v620 = vsel %vm619, %v616, 0.0
          %621 = vadd.xlane.f32.xlu0 %v620
          %v622 = vpop.xlane.xlu0 %621
          %v623 = vrcp.pop 32.0
          %v624 = vmul.f32 32.0, %v623
          %v625 = vsub.f32 1.0, %v624
          %v626 = vmul.f32 %v623, %v625
          %v627 = vadd.f32 %v623, %v626
          %vm628 = vweird.f32 %v623
          %v629 = vsel %vm628, %v623, %v627
          %v630 = vmul.f32 %v622, %v629
          %v631 = vsub.f32 %v616, %v630
          %v632 = vmul.f32 %v631, %v631
          %v633 = vsel %vm619, %v632, 0.0
          %634 = vadd.xlane.f32.xlu0 %v633
          %v635 = vpop.xlane.xlu0 %634
          %v636 = vmul.f32 %v635, %v629
          %v637 = vadd.f32 %v636, 1e-05
          %v638 = vrsqrt.pop %v637
          %v639 = vmul.f32 %v638, %v637
          %v640 = vmul.f32 %v639, %v638
          %v641 = vmul.f32 0.5, %v640
          %v642 = vsub.f32 1.5, %v641
          %v643 = vmul.f32 %v638, %v642
          %vm644 = vweird.f32 %v637
          %vm645 = vweird.f32 %v638
          %vm646 = vmor %vm644, %vm645
          %v647 = vsel %vm646, %v638, %v643
          %v648 = vmul.f32 %v631, %v647
          %v650 = vperm.slane %v617, 0
          %v652 = vmul.f32 %v648, %v650
          %v654 = vperm.slane %v618, 0
          %v656 = vadd.f32 %v652, %v654
          %v657 = vld [vmem:[#allocation14] sm:$0xff]
          %v658 = vld [vmem:[#allocation14 + $0x8] sm:$0xff]
          %v659 = vld [vmem:[#allocation14 + $0x10] sm:$0xff]
          %v660 = vld [vmem:[#allocation14 + $0x18] sm:$0xff]
          %v661 = vld [vmem:[%s9] sm:$0x1]
          %v663 = vperm.slane %v661, 0
          %v666 = vsel %vm619, %v656, 0
          %668 = vmatpush.msra.mxu0 0.0
          %669 = vmatpush.msra.mxu0 0.0
          %670 = vmatpush.msra.mxu0 0.0
          %671 = vmatpush.msra.mxu0 0.0
          %672 = vmatpush.msra.mxu0 0.0
          %673 = vmatpush.msra.mxu0 0.0
          %674 = vmatpush.msra.mxu0 0.0
          %675 = vmatpush.msra.mxu0 0.0
          %676 = vmatpush.msra.mxu0 0.0
          %677 = vmatpush.msra.mxu0 0.0
          %678 = vmatpush.msra.mxu0 0.0
          %679 = vmatpush.msra.mxu0 0.0
          %680 = vmatpush.msra.mxu0 %v660
          %681 = vmatpush.msra.mxu0 %v659
          %682 = vmatpush.msra.mxu0 %v658
          %683 = vmatpush.msra.mxu0 %v657
          %684 = vmatmul.f32.gmra.mxu0 %v666
          %v685 = vpop.f32.mrf.mxu0
          %v686 = vadd.f32 %v663, %v685
          %687 = vdwg.mxu0
          %688 = vst.msk [vmem:[#allocation2] sm:$0xff] %vm619, %v686
          %v689 = vld [vmem:[#allocation15] sm:$0xff]
          %v690 = vld [vmem:[#allocation15 + $0x8] sm:$0xff]
          %v691 = vld [vmem:[#allocation15 + $0x10] sm:$0xff]
          %v692 = vld [vmem:[#allocation15 + $0x18] sm:$0xff]
          %v693 = vld [vmem:[%s10] sm:$0x1]
          %v695 = vperm.slane %v693, 0
          %697 = vmatpush.msra.mxu0 0.0
          %698 = vmatpush.msra.mxu0 0.0
          %699 = vmatpush.msra.mxu0 0.0
          %700 = vmatpush.msra.mxu0 0.0
          %701 = vmatpush.msra.mxu0 0.0
          %702 = vmatpush.msra.mxu0 0.0
          %703 = vmatpush.msra.mxu0 0.0
          %704 = vmatpush.msra.mxu0 0.0
          %705 = vmatpush.msra.mxu0 0.0
          %706 = vmatpush.msra.mxu0 0.0
          %707 = vmatpush.msra.mxu0 0.0
          %708 = vmatpush.msra.mxu0 0.0
          %709 = vmatpush.msra.mxu0 %v692
          %710 = vmatpush.msra.mxu0 %v691
          %711 = vmatpush.msra.mxu0 %v690
          %712 = vmatpush.msra.mxu0 %v689
          %713 = vmatmul.f32.gmra.mxu0 %v666
          %v714 = vpop.f32.mrf.mxu0
          %v715 = vadd.f32 %v695, %v714
          %716 = vdwg.mxu0
          %717 = vst.msk [vmem:[#allocation3] sm:$0xff] %vm619, %v715
        $region104: #{tpu_custom_call.1} parent=71 // pred_fallthru
          _
        %v718 = vld [vmem:[%s520] sm:$0xff]
        %v719 = vld [vmem:[%s3] sm:$0x1]
        %v720 = vld [vmem:[%s4] sm:$0x1]
        %vm721 = vcmask 261120
        %v722 = vsel %vm721, %v718, 0.0
        %723 = vadd.xlane.f32.xlu0 %v722
        %v724 = vpop.xlane.xlu0 %723
        %v725 = vrcp.pop 32.0
        %v726 = vmul.f32 32.0, %v725
        %v727 = vsub.f32 1.0, %v726
        %v728 = vmul.f32 %v725, %v727
        %v729 = vadd.f32 %v725, %v728
        %vm730 = vweird.f32 %v725
        %v731 = vsel %vm730, %v725, %v729
        %v732 = vmul.f32 %v724, %v731
        %v733 = vsub.f32 %v718, %v732
        %v734 = vmul.f32 %v733, %v733
        %v735 = vsel %vm721, %v734, 0.0
        %736 = vadd.xlane.f32.xlu0 %v735
        %v737 = vpop.xlane.xlu0 %736
        %v738 = vmul.f32 %v737, %v731
        %v739 = vadd.f32 %v738, 1e-05
        %v740 = vrsqrt.pop %v739
        %v741 = vmul.f32 %v740, %v739
        %v742 = vmul.f32 %v741, %v740
        %v743 = vmul.f32 0.5, %v742
        %v744 = vsub.f32 1.5, %v743
        %v745 = vmul.f32 %v740, %v744
        %vm746 = vweird.f32 %v739
        %vm747 = vweird.f32 %v740
        %vm748 = vmor %vm746, %vm747
        %v749 = vsel %vm748, %v740, %v745
        %v750 = vmul.f32 %v733, %v749
        %v752 = vperm.slane %v719, 0
        %v754 = vmul.f32 %v750, %v752
        %v756 = vperm.slane %v720, 0
        %v758 = vadd.f32 %v754, %v756
        %v759 = vld [vmem:[#allocation12] sm:$0xff]
        %v760 = vld [vmem:[#allocation12 + $0x8] sm:$0xff]
        %v761 = vld [vmem:[#allocation12 + $0x10] sm:$0xff]
        %v762 = vld [vmem:[#allocation12 + $0x18] sm:$0xff]
        %v763 = vld [vmem:[%s8] sm:$0x1]
        %v765 = vperm.slane %v763, 0
        %v768 = vsel %vm721, %v758, 0
        %770 = vmatpush.msra.mxu0 0.0
        %771 = vmatpush.msra.mxu0 0.0
        %772 = vmatpush.msra.mxu0 0.0
        %773 = vmatpush.msra.mxu0 0.0
        %774 = vmatpush.msra.mxu0 0.0
        %775 = vmatpush.msra.mxu0 0.0
        %776 = vmatpush.msra.mxu0 0.0
        %777 = vmatpush.msra.mxu0 0.0
        %778 = vmatpush.msra.mxu0 0.0
        %779 = vmatpush.msra.mxu0 0.0
        %780 = vmatpush.msra.mxu0 0.0
        %781 = vmatpush.msra.mxu0 0.0
        %782 = vmatpush.msra.mxu0 %v762
        %783 = vmatpush.msra.mxu0 %v761
        %784 = vmatpush.msra.mxu0 %v760
        %785 = vmatpush.msra.mxu0 %v759
        %786 = vmatmul.f32.gmra.mxu0 %v768
        %v787 = vpop.f32.mrf.mxu0
        %v788 = vadd.f32 %v765, %v787
        %789 = vdwg.mxu0
        %790 = vst.msk [vmem:[#allocation4] sm:$0xff] %vm721, %v788
        %v791 = vld [vmem:[%s539] sm:$0x1]
        %s792 = smul.u32 %s40, 8
        %v793 = vlaneseq
        %v794 = vshrl.u32 %v793, 7
        %v795 = vstv %s792
        %v796 = vadd.s32 %v795, %v794
        %v797 = vlaneseq
        %v798 = vand.u32 %v797, 127
        %vm799 = vcmp.gt.s32.totalorder %v798, %v796
        %v800 = vsel %vm799, -1e+30, 0.0
        %v802 = vperm.slane %v791, 0
        %v804 = vadd.f32 %v802, %v800
        %v805 = vld [vmem:[#allocation4] sm:$0xff]
        %v806 = vld [vmem:[#allocation2] sm:$0xff]
        %v807 = vld [vmem:[#allocation3] sm:$0xff]
        %vm808 = vcmask 64512
        %v810 = vsel %vm808, %v805, 0
        %v813 = vsel %vm808, %v806, 0
        %815 = vmatpush.xpose.msra.mxu0 0.0
        %816 = vmatpush.xpose.msra.mxu0 0.0
        %817 = vmatpush.xpose.msra.mxu0 0.0
        %818 = vmatpush.xpose.msra.mxu0 0.0
        %819 = vmatpush.xpose.msra.mxu0 0.0
        %820 = vmatpush.xpose.msra.mxu0 0.0
        %821 = vmatpush.xpose.msra.mxu0 0.0
        %822 = vmatpush.xpose.msra.mxu0 0.0
        %823 = vmatpush.xpose.msra.mxu0 0.0
        %824 = vmatpush.xpose.msra.mxu0 0.0
        %825 = vmatpush.xpose.msra.mxu0 0.0
        %826 = vmatpush.xpose.msra.mxu0 0.0
        %827 = vmatpush.xpose.msra.mxu0 0.0
        %828 = vmatpush.xpose.msra.mxu0 0.0
        %829 = vmatpush.xpose.msra.mxu0 0.0
        %830 = vmatpush.xpose.msra.mxu0 %v813
        %831 = vmatmul.f32.gmra.mxu0 %v810
        %v832 = vpop.f32.mrf.mxu0
        %v833 = vadd.f32 %v804, %v832
        %834 = vdwg.mxu0
        %v835 = vsel %vm808, %v833, -inf
        %836 = vmax.xlane.f32.xlu0 %v835
        %v837 = vpop.xlane.xlu0 %836
        %v838 = vsub.f32 %v833, %v837
        %v839 = vmul.f32 %v838, 1.442695
        %v840 = vpow.pop %v839
        %v841 = vsel %vm808, %v840, 0.0
        %842 = vadd.xlane.f32.xlu0 %v841
        %v843 = vpop.xlane.xlu0 %842
        %v844 = vrcp.pop %v843
        %v845 = vmul.f32 %v843, %v844
        %v846 = vsub.f32 1.0, %v845
        %v847 = vmul.f32 %v844, %v846
        %v848 = vadd.f32 %v844, %v847
        %vm849 = vweird.f32 %v843
        %vm850 = vweird.f32 %v844
        %vm851 = vmor %vm849, %vm850
        %v852 = vsel %vm851, %v844, %v848
        %v853 = vand.u32 2147483647, %v843
        %vm854 = vcmp.eq.f32.partialorder %v853, 8.507059e+37
        %v855 = vand.u32 %v843, 2147483648
        %v856 = vor.u32 1.1754944e-38, %v855
        %v857 = vsel %vm854, %v856, %v852
        %v858 = vmul.f32 1.0, %v857
        %v859 = vmul.f32 %v840, %v858
        %v861 = vsel %vm808, %v859, 0
        %863 = vmatpush.msra.mxu0 0.0
        %864 = vmatpush.msra.mxu0 0.0
        %865 = vmatpush.msra.mxu0 0.0
        %866 = vmatpush.msra.mxu0 0.0
        %867 = vmatpush.msra.mxu0 0.0
        %868 = vmatpush.msra.mxu0 0.0
        %869 = vmatpush.msra.mxu0 0.0
        %870 = vmatpush.msra.mxu0 0.0
        %871 = vmatpush.msra.mxu0 0.0
        %872 = vmatpush.msra.mxu0 0.0
        %873 = vmatpush.msra.mxu0 0.0
        %874 = vmatpush.msra.mxu0 0.0
        %875 = vmatpush.msra.mxu0 0.0
        %876 = vmatpush.msra.mxu0 0.0
        %877 = vmatpush.msra.mxu0 0.0
        %878 = vmatpush.msra.mxu0 %v807
        %879 = vmatmul.f32.gmra.mxu0 %v861
        %v880 = vpop.f32.mrf.mxu0
        %v881 = vadd.f32 0.0, %v880
        %882 = vdwg.mxu0
        %883 = vst.msk [vmem:[#allocation5] sm:$0xff] %vm808, %v881
        %v884 = vld [vmem:[#allocation4] sm:$0xff]
        %v885 = vld [vmem:[#allocation2] sm:$0xff]
        %v886 = vld [vmem:[#allocation3] sm:$0xff]
        %888 = vrot.lane.b32.xlu0 %v884, 120
        %v889 = vpop.permute.xlu0 %888
        %891 = vrot.lane.b32.xlu0 %v885, 120
        %v892 = vpop.permute.xlu0 %891
        %v893 = vsel %vm808, %v889, 0
        %v895 = vsel %vm808, %v892, 0
        %897 = vmatpush.xpose.msra.mxu0 0.0
        %898 = vmatpush.xpose.msra.mxu0 0.0
        %899 = vmatpush.xpose.msra.mxu0 0.0
        %900 = vmatpush.xpose.msra.mxu0 0.0
        %901 = vmatpush.xpose.msra.mxu0 0.0
        %902 = vmatpush.xpose.msra.mxu0 0.0
        %903 = vmatpush.xpose.msra.mxu0 0.0
        %904 = vmatpush.xpose.msra.mxu0 0.0
        %905 = vmatpush.xpose.msra.mxu0 0.0
        %906 = vmatpush.xpose.msra.mxu0 0.0
        %907 = vmatpush.xpose.msra.mxu0 0.0
        %908 = vmatpush.xpose.msra.mxu0 0.0
        %909 = vmatpush.xpose.msra.mxu0 0.0
        %910 = vmatpush.xpose.msra.mxu0 0.0
        %911 = vmatpush.xpose.msra.mxu0 0.0
        %912 = vmatpush.xpose.msra.mxu0 %v895
        %913 = vmatmul.f32.gmra.mxu0 %v893
        %v914 = vpop.f32.mrf.mxu0
        %v915 = vadd.f32 %v804, %v914
        %916 = vdwg.mxu0
        %v917 = vsel %vm808, %v915, -inf
        %918 = vmax.xlane.f32.xlu0 %v917
        %v919 = vpop.xlane.xlu0 %918
        %v920 = vsub.f32 %v915, %v919
        %v921 = vmul.f32 %v920, 1.442695
        %v922 = vpow.pop %v921
        %v923 = vsel %vm808, %v922, 0.0
        %924 = vadd.xlane.f32.xlu0 %v923
        %v925 = vpop.xlane.xlu0 %924
        %v926 = vrcp.pop %v925
        %v927 = vmul.f32 %v925, %v926
        %v928 = vsub.f32 1.0, %v927
        %v929 = vmul.f32 %v926, %v928
        %v930 = vadd.f32 %v926, %v929
        %vm931 = vweird.f32 %v925
        %vm932 = vweird.f32 %v926
        %vm933 = vmor %vm931, %vm932
        %v934 = vsel %vm933, %v926, %v930
        %v935 = vand.u32 2147483647, %v925
        %vm936 = vcmp.eq.f32.partialorder %v935, 8.507059e+37
        %v937 = vand.u32 %v925, 2147483648
        %v938 = vor.u32 1.1754944e-38, %v937
        %v939 = vsel %vm936, %v938, %v934
        %v940 = vmul.f32 1.0, %v939
        %v941 = vmul.f32 %v922, %v940
        %943 = vrot.lane.b32.xlu0 %v886, 120
        %v944 = vpop.permute.xlu0 %943
        %v947 = vsel %vm808, %v941, 0
        %949 = vmatpush.msra.mxu0 0.0
        %950 = vmatpush.msra.mxu0 0.0
        %951 = vmatpush.msra.mxu0 0.0
        %952 = vmatpush.msra.mxu0 0.0
        %953 = vmatpush.msra.mxu0 0.0
        %954 = vmatpush.msra.mxu0 0.0
        %955 = vmatpush.msra.mxu0 0.0
        %956 = vmatpush.msra.mxu0 0.0
        %957 = vmatpush.msra.mxu0 0.0
        %958 = vmatpush.msra.mxu0 0.0
        %959 = vmatpush.msra.mxu0 0.0
        %960 = vmatpush.msra.mxu0 0.0
        %961 = vmatpush.msra.mxu0 0.0
        %962 = vmatpush.msra.mxu0 0.0
        %963 = vmatpush.msra.mxu0 0.0
        %964 = vmatpush.msra.mxu0 %v944
        %965 = vmatmul.f32.gmra.mxu0 %v947
        %v966 = vpop.f32.mrf.mxu0
        %v967 = vadd.f32 0.0, %v966
        %968 = vdwg.mxu0
        %970 = vrot.lane.b32.xlu0 %v967, 8
        %v971 = vpop.permute.xlu0 %970
        %vm973 = vcmask 130112
        %974 = vst.msk [vmem:[#allocation5] sm:$0xff] %vm973, %v971
        %v975 = vld [vmem:[#allocation4] sm:$0xff]
        %v976 = vld [vmem:[#allocation2] sm:$0xff]
        %v977 = vld [vmem:[#allocation3] sm:$0xff]
        %979 = vrot.lane.b32.xlu0 %v975, 112
        %v980 = vpop.permute.xlu0 %979
        %982 = vrot.lane.b32.xlu0 %v976, 112
        %v983 = vpop.permute.xlu0 %982
        %v984 = vsel %vm808, %v980, 0
        %v986 = vsel %vm808, %v983, 0
        %988 = vmatpush.xpose.msra.mxu0 0.0
        %989 = vmatpush.xpose.msra.mxu0 0.0
        %990 = vmatpush.xpose.msra.mxu0 0.0
        %991 = vmatpush.xpose.msra.mxu0 0.0
        %992 = vmatpush.xpose.msra.mxu0 0.0
        %993 = vmatpush.xpose.msra.mxu0 0.0
        %994 = vmatpush.xpose.msra.mxu0 0.0
        %995 = vmatpush.xpose.msra.mxu0 0.0
        %996 = vmatpush.xpose.msra.mxu0 0.0
        %997 = vmatpush.xpose.msra.mxu0 0.0
        %998 = vmatpush.xpose.msra.mxu0 0.0
        %999 = vmatpush.xpose.msra.mxu0 0.0
        %1000 = vmatpush.xpose.msra.mxu0 0.0
        %1001 = vmatpush.xpose.msra.mxu0 0.0
        %1002 = vmatpush.xpose.msra.mxu0 0.0
        %1003 = vmatpush.xpose.msra.mxu0 %v986
        %1004 = vmatmul.f32.gmra.mxu0 %v984
        %v1005 = vpop.f32.mrf.mxu0
        %v1006 = vadd.f32 %v804, %v1005
        %1007 = vdwg.mxu0
        %v1008 = vsel %vm808, %v1006, -inf
        %1009 = vmax.xlane.f32.xlu0 %v1008
        %v1010 = vpop.xlane.xlu0 %1009
        %v1011 = vsub.f32 %v1006, %v1010
        %v1012 = vmul.f32 %v1011, 1.442695
        %v1013 = vpow.pop %v1012
        %v1014 = vsel %vm808, %v1013, 0.0
        %1015 = vadd.xlane.f32.xlu0 %v1014
        %v1016 = vpop.xlane.xlu0 %1015
        %v1017 = vrcp.pop %v1016
        %v1018 = vmul.f32 %v1016, %v1017
        %v1019 = vsub.f32 1.0, %v1018
        %v1020 = vmul.f32 %v1017, %v1019
        %v1021 = vadd.f32 %v1017, %v1020
        %vm1022 = vweird.f32 %v1016
        %vm1023 = vweird.f32 %v1017
        %vm1024 = vmor %vm1022, %vm1023
        %v1025 = vsel %vm1024, %v1017, %v1021
        %v1026 = vand.u32 2147483647, %v1016
        %vm1027 = vcmp.eq.f32.partialorder %v1026, 8.507059e+37
        %v1028 = vand.u32 %v1016, 2147483648
        %v1029 = vor.u32 1.1754944e-38, %v1028
        %v1030 = vsel %vm1027, %v1029, %v1025
        %v1031 = vmul.f32 1.0, %v1030
        %v1032 = vmul.f32 %v1013, %v1031
        %1034 = vrot.lane.b32.xlu0 %v977, 112
        %v1035 = vpop.permute.xlu0 %1034
        %v1038 = vsel %vm808, %v1032, 0
        %1040 = vmatpush.msra.mxu0 0.0
        %1041 = vmatpush.msra.mxu0 0.0
        %1042 = vmatpush.msra.mxu0 0.0
        %1043 = vmatpush.msra.mxu0 0.0
        %1044 = vmatpush.msra.mxu0 0.0
        %1045 = vmatpush.msra.mxu0 0.0
        %1046 = vmatpush.msra.mxu0 0.0
        %1047 = vmatpush.msra.mxu0 0.0
        %1048 = vmatpush.msra.mxu0 0.0
        %1049 = vmatpush.msra.mxu0 0.0
        %1050 = vmatpush.msra.mxu0 0.0
        %1051 = vmatpush.msra.mxu0 0.0
        %1052 = vmatpush.msra.mxu0 0.0
        %1053 = vmatpush.msra.mxu0 0.0
        %1054 = vmatpush.msra.mxu0 0.0
        %1055 = vmatpush.msra.mxu0 %v1035
        %1056 = vmatmul.f32.gmra.mxu0 %v1038
        %v1057 = vpop.f32.mrf.mxu0
        %v1058 = vadd.f32 0.0, %v1057
        %1059 = vdwg.mxu0
        %1061 = vrot.lane.b32.xlu0 %v1058, 16
        %v1062 = vpop.permute.xlu0 %1061
        %vm1064 = vcmask 195712
        %1065 = vst.msk [vmem:[#allocation5] sm:$0xff] %vm1064, %v1062
        %v1066 = vld [vmem:[#allocation4] sm:$0xff]
        %v1067 = vld [vmem:[#allocation2] sm:$0xff]
        %v1068 = vld [vmem:[#allocation3] sm:$0xff]
        %1070 = vrot.lane.b32.xlu0 %v1066, 104
        %v1071 = vpop.permute.xlu0 %1070
        %1073 = vrot.lane.b32.xlu0 %v1067, 104
        %v1074 = vpop.permute.xlu0 %1073
        %v1075 = vsel %vm808, %v1071, 0
        %v1077 = vsel %vm808, %v1074, 0
        %1079 = vmatpush.xpose.msra.mxu0 0.0
        %1080 = vmatpush.xpose.msra.mxu0 0.0
        %1081 = vmatpush.xpose.msra.mxu0 0.0
        %1082 = vmatpush.xpose.msra.mxu0 0.0
        %1083 = vmatpush.xpose.msra.mxu0 0.0
        %1084 = vmatpush.xpose.msra.mxu0 0.0
        %1085 = vmatpush.xpose.msra.mxu0 0.0
        %1086 = vmatpush.xpose.msra.mxu0 0.0
        %1087 = vmatpush.xpose.msra.mxu0 0.0
        %1088 = vmatpush.xpose.msra.mxu0 0.0
        %1089 = vmatpush.xpose.msra.mxu0 0.0
        %1090 = vmatpush.xpose.msra.mxu0 0.0
        %1091 = vmatpush.xpose.msra.mxu0 0.0
        %1092 = vmatpush.xpose.msra.mxu0 0.0
        %1093 = vmatpush.xpose.msra.mxu0 0.0
        %1094 = vmatpush.xpose.msra.mxu0 %v1077
        %1095 = vmatmul.f32.gmra.mxu0 %v1075
        %v1096 = vpop.f32.mrf.mxu0
        %v1097 = vadd.f32 %v804, %v1096
        %1098 = vdwg.mxu0
        %v1099 = vsel %vm808, %v1097, -inf
        %1100 = vmax.xlane.f32.xlu0 %v1099
        %v1101 = vpop.xlane.xlu0 %1100
        %v1102 = vsub.f32 %v1097, %v1101
        %v1103 = vmul.f32 %v1102, 1.442695
        %v1104 = vpow.pop %v1103
        %v1105 = vsel %vm808, %v1104, 0.0
        %1106 = vadd.xlane.f32.xlu0 %v1105
        %v1107 = vpop.xlane.xlu0 %1106
        %v1108 = vrcp.pop %v1107
        %v1109 = vmul.f32 %v1107, %v1108
        %v1110 = vsub.f32 1.0, %v1109
        %v1111 = vmul.f32 %v1108, %v1110
        %v1112 = vadd.f32 %v1108, %v1111
        %vm1113 = vweird.f32 %v1107
        %vm1114 = vweird.f32 %v1108
        %vm1115 = vmor %vm1113, %vm1114
        %v1116 = vsel %vm1115, %v1108, %v1112
        %v1117 = vand.u32 2147483647, %v1107
        %vm1118 = vcmp.eq.f32.partialorder %v1117, 8.507059e+37
        %v1119 = vand.u32 %v1107, 2147483648
        %v1120 = vor.u32 1.1754944e-38, %v1119
        %v1121 = vsel %vm1118, %v1120, %v1116
        %v1122 = vmul.f32 1.0, %v1121
        %v1123 = vmul.f32 %v1104, %v1122
        %1125 = vrot.lane.b32.xlu0 %v1068, 104
        %v1126 = vpop.permute.xlu0 %1125
        %v1129 = vsel %vm808, %v1123, 0
        %1131 = vmatpush.msra.mxu0 0.0
        %1132 = vmatpush.msra.mxu0 0.0
        %1133 = vmatpush.msra.mxu0 0.0
        %1134 = vmatpush.msra.mxu0 0.0
        %1135 = vmatpush.msra.mxu0 0.0
        %1136 = vmatpush.msra.mxu0 0.0
        %1137 = vmatpush.msra.mxu0 0.0
        %1138 = vmatpush.msra.mxu0 0.0
        %1139 = vmatpush.msra.mxu0 0.0
        %1140 = vmatpush.msra.mxu0 0.0
        %1141 = vmatpush.msra.mxu0 0.0
        %1142 = vmatpush.msra.mxu0 0.0
        %1143 = vmatpush.msra.mxu0 0.0
        %1144 = vmatpush.msra.mxu0 0.0
        %1145 = vmatpush.msra.mxu0 0.0
        %1146 = vmatpush.msra.mxu0 %v1126
        %1147 = vmatmul.f32.gmra.mxu0 %v1129
        %v1148 = vpop.f32.mrf.mxu0
        %v1149 = vadd.f32 0.0, %v1148
        %1150 = vdwg.mxu0
        %1152 = vrot.lane.b32.xlu0 %v1149, 24
        %v1153 = vpop.permute.xlu0 %1152
        %vm1155 = vcmask 261312
        %1156 = vst.msk [vmem:[#allocation5] sm:$0xff] %vm1155, %v1153
        %v1157 = vld [vmem:[#allocation5] sm:$0xff]
        %v1158 = vld [vmem:[#allocation17] sm:$0xff]
        %v1159 = vld [vmem:[#allocation17 + $0x8] sm:$0xff]
        %v1160 = vld [vmem:[#allocation17 + $0x10] sm:$0xff]
        %v1161 = vld [vmem:[#allocation17 + $0x18] sm:$0xff]
        %v1162 = vld [vmem:[%s12] sm:$0x1]
        %v1164 = vperm.slane %v1162, 0
        %v1167 = vsel %vm721, %v1157, 0
        %1169 = vmatpush.msra.mxu0 0.0
        %1170 = vmatpush.msra.mxu0 0.0
        %1171 = vmatpush.msra.mxu0 0.0
        %1172 = vmatpush.msra.mxu0 0.0
        %1173 = vmatpush.msra.mxu0 0.0
        %1174 = vmatpush.msra.mxu0 0.0
        %1175 = vmatpush.msra.mxu0 0.0
        %1176 = vmatpush.msra.mxu0 0.0
        %1177 = vmatpush.msra.mxu0 0.0
        %1178 = vmatpush.msra.mxu0 0.0
        %1179 = vmatpush.msra.mxu0 0.0
        %1180 = vmatpush.msra.mxu0 0.0
        %1181 = vmatpush.msra.mxu0 %v1161
        %1182 = vmatpush.msra.mxu0 %v1160
        %1183 = vmatpush.msra.mxu0 %v1159
        %1184 = vmatpush.msra.mxu0 %v1158
        %1185 = vmatmul.f32.gmra.mxu0 %v1167
        %v1186 = vpop.f32.mrf.mxu0
        %v1187 = vadd.f32 %v1164, %v1186
        %1188 = vdwg.mxu0
        %v1189 = vadd.f32 %v758, %v1187
        %1190 = vst.msk [vmem:[%s611] sm:$0xff] %vm721, %v1189
        %s1191 = sand.u32 %s347, 1
        %s1192 = scalar_lea.sflag [#allocation8], %s1191
        %s1193 = sand.u32 %s347, 1
        %s1194 = smul.addr %s1193, 8
        %s1195 = scalar_lea.vmem [#allocation18], %s1194
        // Predicated region
        $region105: #{tpu_custom_call.1} parent=71 // pred_check
          %p1196 = pneg %p357
        $region106: #{tpu_custom_call.1} parent=71 // pred_check_branch
          %1198 = sbr.rel (%p1196) target = $region108
        $region107: #{tpu_custom_call.1} parent=71 // pred_region
          %1200 = vsyncadd %s1192, 0
          %s1201 = sadd.s32 %s40, %s39
          %s1202 = smul.addr %s1201, 8
          %s1203 = scalar_lea.hbm %s13, %s1202
          %s1205 = sshll.u32 %s1195, 4
          %s1206 = int_to_ptr.vmem [resolvable:$true] %s1205
          %s1207 = sshll.u32 %s1203, 4
          %s1208 = int_to_ptr.hbm [resolvable:$true] %s1207
          %1210 = dma.vmem_to_hbm [thread:$0]  %s1206, 128, %s1208, %s1192
        $region108: #{tpu_custom_call.1} parent=71 // pred_fallthru
          _
      $region72: #{tpu_custom_call.1} parent=5 // pred_fallthru
        _
      %p1211 = scmp.le.s32.totalorder 2, %s30
      // Predicated region
      $region109: #{tpu_custom_call.1} parent=5 // pred_check
        %p1212 = pneg %p1211
      $region110: #{tpu_custom_call.1} parent=5 // pred_check_branch
        %1214 = sbr.rel (%p1212) target = $region112
      $region111: #{tpu_custom_call.1} parent=5 // pred_region
        %s1215 = ssub.s32 %s30, 2
        // Predicated region
        $region113: #{tpu_custom_call.1} parent=111 // pred_check
          %p1216 = pneg %p363
        $region114: #{tpu_custom_call.1} parent=111 // pred_check_branch
          %1218 = sbr.rel (%p1216) target = $region116
        $region115: #{tpu_custom_call.1} parent=111 // pred_region
          %s1219 = sand.u32 %s348, 1
          %s1220 = scalar_lea.sflag [#allocation8], %s1219
          %s1221 = sand.u32 %s348, 1
          %s1222 = smul.addr %s1221, 8
          %s1223 = scalar_lea.vmem [#allocation18], %s1222
          %1225 = dma.done %s1220, 128
        $region116: #{tpu_custom_call.1} parent=111 // pred_fallthru
          _
      $region112: #{tpu_custom_call.1} parent=5 // pred_fallthru
        _
    $region6: #{tpu_custom_call.1} parent=1 // loop_footer
      %s34 = sadd.s32 1, %s30
    $region7: #{tpu_custom_call.1} parent=1 // loop_footer_branch
      %29 = sbr.rel target = $region3
    $region8: #{tpu_custom_call.1} parent=1 // loop_exit
      _
    %1226 = vsyncpa [#allocation7], 1
    %s1227 = scalar_lea.sflag [#allocation7], 1
    %1228 = vsyncpa %s1227, 1
    %1229 = vsyncpa [#allocation10], 1
    %s1230 = scalar_lea.sflag [#allocation10], 1
    %1231 = vsyncpa %s1230, 1
    %1232 = vsyncpa [#allocation13], 1
    %1233 = vsyncpa [#allocation16], 1
    %1234 = vsyncpa [#allocation8], 1
    %s1235 = scalar_lea.sflag [#allocation8], 1
    %1236 = vsyncpa %s1235, 1

</llo_original>
